<compile_context>
chip_gen: v6e
topology: v6e:2x2x1
jax: 0.10.0
libtpu: 0.0.40
codegen_flags: <defaults>
</compile_context>

<pallas_src>
import math
import numpy as np
import jax
import jax.numpy as jnp
from jax.experimental import pallas as pl
from jax.experimental.pallas import tpu as pltpu


# --------------------------- Pallas kernels ---------------------------------

def _l0_kernel(g_ref, tgt_ref, rc_ref, out_ref):
    # L == 0: contribution = gathered (pre-scaled, bf16) node features,
    # segment-summed into the running r_contribution (resident output block,
    # aliased to rc in HBM).
    e = pl.program_id(0)

    @pl.when(e == 0)
    def _init():
        out_ref[...] = rc_ref[...]

    N = out_ref.shape[0]
    Eb = g_ref.shape[0]
    seg = (jax.lax.broadcasted_iota(jnp.int32, (N, Eb), 0)
           == tgt_ref[...]).astype(jnp.bfloat16)
    out_ref[...] += jnp.dot(seg, g_ref[...],
                            preferred_element_type=jnp.float32)


def _gin_kernel(g_ref, t_ref, tgt_ref, rc_ref,
                w0_ref, b0_ref, w1_ref, b1_ref, out_ref):
    # CustomGINConv (propagation + 2-layer MLP) + path-sum + segment-sum,
    # accumulated into the running r_contribution.
    #   g = (1 + eps) * x gathered                 [P, Eb, C]  bf16
    #   t = x@wt_x + emb@wt_e + bt gathered        [P, Eb, C]  bf16
    # Second MLP layer is hoisted after the path-sum (linearity):
    #   sum_p(relu(h_p@w0+b0) @ w1 + b1) == (sum_p relu(h_p@w0+b0)) @ w1 + P*b1
    e = pl.program_id(0)

    @pl.when(e == 0)
    def _init():
        out_ref[...] = rc_ref[...]

    P, Eb, C = g_ref.shape

    # z = sum_p relu(h_p @ w0 + b0); propagation sum done in f32, single bf16
    # cast feeding the MXU.
    z = None
    for p in range(P):
        hp = g_ref[p].astype(jnp.float32)
        if p - 1 >= 0:
            hp = hp + t_ref[p - 1].astype(jnp.float32)
        if p + 1 < P:
            hp = hp + t_ref[p + 1].astype(jnp.float32)
        yp = jnp.dot(hp.astype(jnp.bfloat16), w0_ref[...],
                     preferred_element_type=jnp.float32) + b0_ref[...]
        yp = jnp.maximum(yp, 0.0)
        z = yp if z is None else z + yp

    # Hoisted second layer: one [Eb,C]x[C,C] matmul per grid step.  w1/b1
    # already carry the (1 + r_eps[L]) scale (folded in the wrapper).
    acc = jnp.dot(z.astype(jnp.bfloat16), w1_ref[...],
                  preferred_element_type=jnp.float32) + P * b1_ref[...]

    # segment_csr as a bf16 one-hot matmul (0/1 exact in bf16); padded columns
    # carry tgt = -1 -> all-zero column -> no contribution.
    N = out_ref.shape[0]
    seg = (jax.lax.broadcasted_iota(jnp.int32, (N, Eb), 0)
           == tgt_ref[...]).astype(jnp.bfloat16)
    out_ref[...] += jnp.dot(seg, acc.astype(jnp.bfloat16),
                            preferred_element_type=jnp.float32)


def _final_kernel(xs_ref, rc_ref, w0_ref, b0_ref, w1_ref, b1_ref, out_ref):
    # conv_final MLP applied to (1+eps)*x + r_contribution.  (1+eps) is folded
    # into xs in the wrapper; matmul operands bf16, f32 accumulation.
    h = xs_ref[...] + rc_ref[...]
    h = jnp.dot(h.astype(jnp.bfloat16), w0_ref[...],
                preferred_element_type=jnp.float32) + b0_ref[...]
    h = jnp.maximum(h, 0.0)  # nonlinearity='relu', norm=Identity
    out_ref[...] = jnp.dot(h.astype(jnp.bfloat16), w1_ref[...],
                           preferred_element_type=jnp.float32) + b1_ref[...]


# --------------------------- pallas_call wrappers ----------------------------

def _round_up(n, m):
    return ((n + m - 1) // m) * m


def l0_segment_add(g0, tgt, rc, e_tile):
    N, C = rc.shape
    e_pad = g0.shape[0]
    return pl.pallas_call(
        _l0_kernel,
        out_shape=jax.ShapeDtypeStruct((N, C), jnp.float32),
        grid=(e_pad // e_tile,),
        in_specs=[
            pl.BlockSpec((e_tile, C), lambda e: (e, 0)),
            pl.BlockSpec((1, e_tile), lambda e: (0, e)),
            pl.BlockSpec((N, C), lambda e: (0, 0)),
        ],
        out_specs=pl.BlockSpec((N, C), lambda e: (0, 0)),
        input_output_aliases={2: 0},      # rc aliased into the output buffer
        compiler_params=pltpu.CompilerParams(
            dimension_semantics=("arbitrary",)),
    )(g0, tgt, rc)


def gin_segment_add(g, t, tgt, rc, w0b, b0, w1b, b1, e_tile):
    P, e_pad, C = g.shape
    N = rc.shape[0]
    return pl.pallas_call(
        _gin_kernel,
        out_shape=jax.ShapeDtypeStruct((N, C), jnp.float32),
        grid=(e_pad // e_tile,),
        in_specs=[
            pl.BlockSpec((P, e_tile, C), lambda e: (0, e, 0)),
            pl.BlockSpec((P, e_tile, C), lambda e: (0, e, 0)),
            pl.BlockSpec((1, e_tile), lambda e: (0, e)),
            pl.BlockSpec((N, C), lambda e: (0, 0)),
            pl.BlockSpec((C, C), lambda e: (0, 0)),
            pl.BlockSpec((1, C), lambda e: (0, 0)),
            pl.BlockSpec((C, C), lambda e: (0, 0)),
            pl.BlockSpec((1, C), lambda e: (0, 0)),
        ],
        out_specs=pl.BlockSpec((N, C), lambda e: (0, 0)),
        input_output_aliases={3: 0},      # rc aliased into the output buffer
        compiler_params=pltpu.CompilerParams(
            dimension_semantics=("arbitrary",)),
    )(g, t, tgt, rc, w0b, b0, w1b, b1)


def final_mlp(xs, rc, mlp, n_tile=256):
    N, C = xs.shape
    n_tile = min(n_tile, _round_up(N, 8))
    n_pad = _round_up(N, n_tile)
    if n_pad != N:
        xs = jnp.pad(xs, ((0, n_pad - N), (0, 0)))
        rc = jnp.pad(rc, ((0, n_pad - N), (0, 0)))
    w0b = mlp['w0'].astype(jnp.bfloat16)
    w1b = mlp['w1'].astype(jnp.bfloat16)
    out = pl.pallas_call(
        _final_kernel,
        out_shape=jax.ShapeDtypeStruct((n_pad, C), jnp.float32),
        grid=(n_pad // n_tile,),
        in_specs=[
            pl.BlockSpec((n_tile, C), lambda n: (n, 0)),
            pl.BlockSpec((n_tile, C), lambda n: (n, 0)),
            pl.BlockSpec((C, C), lambda n: (0, 0)),
            pl.BlockSpec((1, C), lambda n: (0, 0)),
            pl.BlockSpec((C, C), lambda n: (0, 0)),
            pl.BlockSpec((1, C), lambda n: (0, 0)),
        ],
        out_specs=pl.BlockSpec((n_tile, C), lambda n: (n, 0)),
        compiler_params=pltpu.CompilerParams(
            dimension_semantics=("parallel",)),
    )(xs, rc, w0b, mlp['b0'], w1b, mlp['b1'])
    return out[:N] if n_pad != N else out


# --------------------------- LoopyLayer forward -------------------------------

def loopy_layer_forward(x, data, params, r, e_tile=256):
    N, C = x.shape
    x = x.astype(jnp.float32)
    rc = jnp.zeros((N, C), jnp.float32)
    for L in range(r + 1):
        loopyNL = data[f'loopyN{L}']          # [L+2, E] int32
        E = loopyNL.shape[1]
        if E == 0:
            continue
        scale = 1.0 + params['r_eps'][L]
        # e_tile=256 fills the v6e/v7x MXU; clamp so tiny layers don't over-pad.
        et = min(e_tile, _round_up(E, 128))
        e_pad = _round_up(E, et)
        pad = e_pad - E
        # Padded target ids = -1 -> never matches a node -> zero seg column.
        tgt = jnp.pad(loopyNL[0], (0, pad), constant_values=-1)
        tgt = tgt.reshape(1, e_pad).astype(jnp.int32)
        # Padded source ids = 0 (valid gather index; masked by the seg column).
        idx = jnp.pad(loopyNL[1:], ((0, 0), (0, pad)))
        if L == 0:
            # fold (1 + r_eps[0]) into the source; bf16 before the gather.
            g0 = (scale * x).astype(jnp.bfloat16)[idx[0]]          # [E_pad, C]
            rc = l0_segment_add(g0, tgt, rc, et)
        else:
            conv = params['convs'][L - 1]                          # shared=False
            atomic = jnp.pad(data[f'loopyA{L}'][1:], ((0, 0), (0, pad)))
            # Hoisted transform_before_conv: project per-node / per-embedding
            # once, cast to bf16 BEFORE the gathers (halves the HBM streams).
            xwb = (x @ conv['wt_x']).astype(jnp.bfloat16)          # [N, C]
            ewb = (conv['embedding'] @ conv['wt_e']
                   + conv['bt']).astype(jnp.bfloat16)              # [num_emb, C]
            t = xwb[idx] + ewb[atomic]                             # [P, E_pad, C] bf16
            g = ((1.0 + conv['eps'][0]) * x).astype(jnp.bfloat16)[idx]
            w0b = conv['w0'].astype(jnp.bfloat16)
            # fold (1 + r_eps[L]) into the second MLP layer
            w1b = (scale * conv['w1']).astype(jnp.bfloat16)
            b1s = scale * conv['b1']
            rc = gin_segment_add(g, t, tgt, rc, w0b, conv['b0'], w1b, b1s, et)
    xs = (1.0 + params['eps'][0]) * x          # fold eps -> no SMEM scalar
    return final_mlp(xs, rc, params['conv_final'])


# --------------------------- pure JAX reference -------------------------------

def reference_forward(x, data, params, r):
    N, _ = x.shape
    rc = jnp.zeros_like(x)
    for L in range(r + 1):
        nL = data[f'loopyN{L}']
        if nL.shape[1] == 0:
            continue
        seg = jax.nn.one_hot(nL[0], N, dtype=jnp.float32).T
        g = x[nL[1:]]
        scale = 1.0 + params['r_eps'][L]
        if L == 0:
            contrib = seg @ g[0]
        else:
            conv = params['convs'][L - 1]
            e = conv['embedding'][data[f'loopyA{L}'][1:]]
            t = (jnp.einsum('pec,cd->ped', g, conv['wt_x'])
                 + jnp.einsum('pec,cd->ped', e, conv['wt_e']) + conv['bt'])
            pad = jnp.zeros((1,) + t.shape[1:], jnp.float32)
            tp = jnp.concatenate([pad, t, pad], axis=0)
            prop = tp[:-2] + tp[2:]
            h = (1.0 + conv['eps'][0]) * g + prop
            h = jnp.einsum('pec,cd->ped', h, conv['w0']) + conv['b0']
            h = jnp.maximum(h, 0.0)
            h = jnp.einsum('pec,cd->ped', h, conv['w1']) + conv['b1']
            contrib = seg @ h.sum(0)
        rc = rc + scale * contrib
    mlp = params['conv_final']
    h = (1.0 + params['eps'][0]) * x + rc
    h = h @ mlp['w0'] + mlp['b0']
    h = jnp.maximum(h, 0.0)
    return h @ mlp['w1'] + mlp['b1']


# --------------------------- parameters & data --------------------------------

def init_params(key, C, r, num_embeddings):
    keys = iter(jax.random.split(key, 64))

    def uniform(k, shape, bound):
        return jax.random.uniform(k, shape, jnp.float32,
                                  minval=-bound, maxval=bound)

    def init_mlp():
        bw = math.sqrt(1.0 / C)
        return dict(
            w0=uniform(next(keys), (C, C), bw),
            b0=uniform(next(keys), (1, C), bw),
            w1=uniform(next(keys), (C, C), bw),
            b1=uniform(next(keys), (1, C), bw),
        )

    def init_conv():
        bt = math.sqrt(1.0 / (2 * C))
        d = dict(
            eps=jnp.ones((1,), jnp.float32),   # CustomGINConv eps init = ones(1)
            embedding=0.1 * jax.random.normal(next(keys),
                                              (num_embeddings, C), jnp.float32),
            wt_x=uniform(next(keys), (C, C), bt),
            wt_e=uniform(next(keys), (C, C), bt),
            bt=uniform(next(keys), (1, C), bt),
        )
        d.update(init_mlp())
        return d

    return dict(
        eps=jnp.zeros((1,), jnp.float32),          # LoopyLayer eps = zeros(1)
        r_eps=jnp.zeros((r + 1,), jnp.float32),    # LoopyLayer r_eps = zeros(r+1)
        convs=[init_conv() for _ in range(r)],     # shared=False -> r convs
        conv_final=init_mlp(),
    )


def make_data(key, N, r, num_embeddings, E_per_L):
    data = {}
    dkeys = iter(jax.random.split(key, 3 * (r + 1)))
    for L in range(r + 1):
        E = E_per_L[L]
        targets = jnp.sort(jax.random.randint(next(dkeys), (1, E), 0, N))
        sources = jax.random.randint(next(dkeys), (L + 1, E), 0, N)
        data[f'loopyN{L}'] = jnp.concatenate([targets, sources], axis=0)
        data[f'loopyA{L}'] = jax.random.randint(next(dkeys), (L + 2, E),
                                                0, num_embeddings)
    return data


# ------------------------------------ main ------------------------------------

if __name__ == "__main__":
    N, C, r = 16, 128, 2                      # in_channels == out_channels; C lane-dense
    num_embeddings = int(math.ceil((r + 1) / 2)) + 1

    key = jax.random.PRNGKey(0)
    k_x, k_params, k_data = jax.random.split(key, 3)

    x = jax.random.normal(k_x, (N, C), jnp.float32)
    params = init_params(k_params, C, r, num_embeddings)
    data = make_data(k_data, N, r, num_embeddings, E_per_L=[24, 16, 16])

    forward = jax.jit(loopy_layer_forward, static_argnames=("r", "e_tile"))
    out = jax.block_until_ready(forward(x, data, params, r=r))

    ref = reference_forward(x, data, params, r)
    assert out.shape == (N, C) and out.dtype == jnp.float32
    # bf16 MXU operands (f32 accumulation) throughout -> slightly relaxed tol
    np.testing.assert_allclose(np.asarray(out), np.asarray(ref),
                               rtol=5e-2, atol=5e-2)
    print("KERNEL_OK")
</pallas_src>

<mosaic_0001>
module attributes {stable_mosaic.version = 11 : i64} {
  func.func @_l0_kernel(%arg0: i32, %arg1: memref<128x128xbf16, #tpu.memory_space<vmem>>, %arg2: memref<1x128xi32, #tpu.memory_space<vmem>>, %arg3: memref<16x128xf32, #tpu.memory_space<vmem>>, %arg4: memref<16x128xf32, #tpu.memory_space<vmem>>) attributes {dimension_semantics = [#tpu.dimension_semantics<arbitrary>], iteration_bounds = array<i64: 1>, scalar_prefetch = 0 : i64, scratch_operands = 0 : i64, tpu.core_type = #tpu.core_type<tc>, window_params = [{transform_indices = @transform_0, window_bounds = array<i64: 128, 128>}, {transform_indices = @transform_1, window_bounds = array<i64: 1, 128>}, {pipeline_mode = #tpu.pipeline_mode<synchronous>, transform_indices = @transform_2, window_bounds = array<i64: 16, 128>}, {pipeline_mode = #tpu.pipeline_mode<synchronous>, transform_indices = @transform_3, window_bounds = array<i64: 16, 128>}]} {
    %c0_i32 = arith.constant 0 : i32
    %0 = arith.cmpi eq, %arg0, %c0_i32 : i32
    %1 = arith.extui %0 : i1 to i32
    %c0_i32_0 = arith.constant 0 : i32
    %2 = arith.cmpi ne, %1, %c0_i32_0 : i32
    scf.if %2 {
      %c0_8 = arith.constant 0 : index
      %c0_9 = arith.constant 0 : index
      %15 = vector.load %arg3[%c0_8, %c0_9] : memref<16x128xf32, #tpu.memory_space<vmem>>, vector<16x128xf32>
      %c0_10 = arith.constant 0 : index
      %c0_11 = arith.constant 0 : index
      %16 = vector.load %arg4[%c0_10, %c0_11] : memref<16x128xf32, #tpu.memory_space<vmem>>, vector<16x128xf32>
      tpu.vector_store %arg4[%c0_10, %c0_11], %15 {strides = array<i32>} : memref<16x128xf32, #tpu.memory_space<vmem>>, vector<16x128xf32>,
    } else {
    }
    %3 = tpu.iota {dimensions = array<i32: 0>} : vector<16x128xi32>
    %c0 = arith.constant 0 : index
    %c0_1 = arith.constant 0 : index
    %4 = vector.load %arg2[%c0, %c0_1] : memref<1x128xi32, #tpu.memory_space<vmem>>, vector<1x128xi32>
    %5 = vector.broadcast %4 : vector<1x128xi32> to vector<16x128xi32>
    %6 = arith.cmpi eq, %3, %5 : vector<16x128xi32>
    %7 = arith.extui %6 : vector<16x128xi1> to vector<16x128xi32>
    %8 = arith.sitofp %7 : vector<16x128xi32> to vector<16x128xf32>
    %9 = arith.truncf %8 : vector<16x128xf32> to vector<16x128xbf16>
    %c0_2 = arith.constant 0 : index
    %c0_3 = arith.constant 0 : index
    %10 = vector.load %arg4[%c0_2, %c0_3] : memref<16x128xf32, #tpu.memory_space<vmem>>, vector<16x128xf32>
    %c0_4 = arith.constant 0 : index
    %c0_5 = arith.constant 0 : index
    %11 = vector.load %arg1[%c0_4, %c0_5] : memref<128x128xbf16, #tpu.memory_space<vmem>>, vector<128x128xbf16>
    %cst = arith.constant dense<0.000000e+00> : vector<16x128xf32>
    %12 = tpu.matmul %9, %11, %cst {dimension_numbers = #tpu.dot_dimension_numbers<[1], [0], [0], [1], [0, 0, 1, 1], [], []>} : vector<16x128xbf16>, vector<128x128xbf16>, vector<16x128xf32> -> vector<16x128xf32>
    %13 = arith.addf %10, %12 : vector<16x128xf32>
    %c0_6 = arith.constant 0 : index
    %c0_7 = arith.constant 0 : index
    %14 = vector.load %arg4[%c0_6, %c0_7] : memref<16x128xf32, #tpu.memory_space<vmem>>, vector<16x128xf32>
    tpu.vector_store %arg4[%c0_6, %c0_7], %13 {strides = array<i32>} : memref<16x128xf32, #tpu.memory_space<vmem>>, vector<16x128xf32>,
    return
  }
  func.func @transform_0(%arg0: i32) -> (i32, i32) {
    %c0_i32 = arith.constant 0 : i32
    %c0_i32_0 = arith.constant 0 : i32
    return %arg0, %c0_i32 : i32, i32
  }
  func.func @transform_1(%arg0: i32) -> (i32, i32) {
    %c0_i32 = arith.constant 0 : i32
    %c0_i32_0 = arith.constant 0 : i32
    return %c0_i32, %arg0 : i32, i32
  }
  func.func @transform_2(%arg0: i32) -> (i32, i32) {
    %c0_i32 = arith.constant 0 : i32
    %c0_i32_0 = arith.constant 0 : i32
    %c0_i32_1 = arith.constant 0 : i32
    return %c0_i32, %c0_i32_0 : i32, i32
  }
  func.func @transform_3(%arg0: i32) -> (i32, i32) {
    %c0_i32 = arith.constant 0 : i32
    %c0_i32_0 = arith.constant 0 : i32
    %c0_i32_1 = arith.constant 0 : i32
    return %c0_i32, %c0_i32_0 : i32, i32
  }
}

module attributes {stable_mosaic.version = 11 : i64} {
  func.func @_gin_kernel(%arg0: i32, %arg1: memref<2x128x128xbf16, #tpu.memory_space<vmem>>, %arg2: memref<2x128x128xbf16, #tpu.memory_space<vmem>>, %arg3: memref<1x128xi32, #tpu.memory_space<vmem>>, %arg4: memref<16x128xf32, #tpu.memory_space<vmem>>, %arg5: memref<128x128xbf16, #tpu.memory_space<vmem>>, %arg6: memref<1x128xf32, #tpu.memory_space<vmem>>, %arg7: memref<128x128xbf16, #tpu.memory_space<vmem>>, %arg8: memref<1x128xf32, #tpu.memory_space<vmem>>, %arg9: memref<16x128xf32, #tpu.memory_space<vmem>>) attributes {dimension_semantics = [#tpu.dimension_semantics<arbitrary>], iteration_bounds = array<i64: 1>, scalar_prefetch = 0 : i64, scratch_operands = 0 : i64, tpu.core_type = #tpu.core_type<tc>, window_params = [{transform_indices = @transform_0, window_bounds = array<i64: 2, 128, 128>}, {transform_indices = @transform_1, window_bounds = array<i64: 2, 128, 128>}, {transform_indices = @transform_2, window_bounds = array<i64: 1, 128>}, {pipeline_mode = #tpu.pipeline_mode<synchronous>, transform_indices = @transform_3, window_bounds = array<i64: 16, 128>}, {pipeline_mode = #tpu.pipeline_mode<synchronous>, transform_indices = @transform_4, window_bounds = array<i64: 128, 128>}, {pipeline_mode = #tpu.pipeline_mode<synchronous>, transform_indices = @transform_5, window_bounds = array<i64: 1, 128>}, {pipeline_mode = #tpu.pipeline_mode<synchronous>, transform_indices = @transform_6, window_bounds = array<i64: 128, 128>}, {pipeline_mode = #tpu.pipeline_mode<synchronous>, transform_indices = @transform_7, window_bounds = array<i64: 1, 128>}, {pipeline_mode = #tpu.pipeline_mode<synchronous>, transform_indices = @transform_8, window_bounds = array<i64: 16, 128>}]} {
    %c0_i32 = arith.constant 0 : i32
    %0 = arith.cmpi eq, %arg0, %c0_i32 : i32
    %1 = arith.extui %0 : i1 to i32
    %c0_i32_0 = arith.constant 0 : i32
    %2 = arith.cmpi ne, %1, %c0_i32_0 : i32
    scf.if %2 {
      %c0_35 = arith.constant 0 : index
      %c0_36 = arith.constant 0 : index
      %54 = vector.load %arg4[%c0_35, %c0_36] : memref<16x128xf32, #tpu.memory_space<vmem>>, vector<16x128xf32>
      %c0_37 = arith.constant 0 : index
      %c0_38 = arith.constant 0 : index
      %55 = vector.load %arg9[%c0_37, %c0_38] : memref<16x128xf32, #tpu.memory_space<vmem>>, vector<16x128xf32>
      tpu.vector_store %arg9[%c0_37, %c0_38], %54 {strides = array<i32>} : memref<16x128xf32, #tpu.memory_space<vmem>>, vector<16x128xf32>,
    } else {
    }
    %c0 = arith.constant 0 : index
    %c0_1 = arith.constant 0 : index
    %c0_2 = arith.constant 0 : index
    %3 = vector.load %arg1[%c0, %c0_1, %c0_2] : memref<2x128x128xbf16, #tpu.memory_space<vmem>>, vector<1x128x128xbf16>
    %4 = vector.shape_cast %3 : vector<1x128x128xbf16> to vector<128x128xbf16>
    %5 = arith.extf %4 : vector<128x128xbf16> to vector<128x128xf32>
    %c1 = arith.constant 1 : index
    %c0_3 = arith.constant 0 : index
    %c0_4 = arith.constant 0 : index
    %6 = vector.load %arg2[%c1, %c0_3, %c0_4] : memref<2x128x128xbf16, #tpu.memory_space<vmem>>, vector<1x128x128xbf16>
    %7 = vector.shape_cast %6 : vector<1x128x128xbf16> to vector<128x128xbf16>
    %8 = arith.extf %7 : vector<128x128xbf16> to vector<128x128xf32>
    %9 = arith.addf %5, %8 : vector<128x128xf32>
    %10 = arith.truncf %9 : vector<128x128xf32> to vector<128x128xbf16>
    %c0_5 = arith.constant 0 : index
    %c0_6 = arith.constant 0 : index
    %11 = vector.load %arg5[%c0_5, %c0_6] : memref<128x128xbf16, #tpu.memory_space<vmem>>, vector<128x128xbf16>
    %cst = arith.constant dense<0.000000e+00> : vector<128x128xf32>
    %12 = tpu.matmul %10, %11, %cst {dimension_numbers = #tpu.dot_dimension_numbers<[1], [0], [0], [1], [0, 0, 1, 1], [], []>} : vector<128x128xbf16>, vector<128x128xbf16>, vector<128x128xf32> -> vector<128x128xf32>
    %c0_7 = arith.constant 0 : index
    %c0_8 = arith.constant 0 : index
    %13 = vector.load %arg6[%c0_7, %c0_8] : memref<1x128xf32, #tpu.memory_space<vmem>>, vector<1x128xf32>
    %14 = vector.broadcast %13 : vector<1x128xf32> to vector<128x128xf32>
    %15 = arith.addf %12, %14 : vector<128x128xf32>
    %cst_9 = arith.constant 0.000000e+00 : f32
    %16 = vector.broadcast %cst_9 : f32 to vector<128x128xf32>
    %17 = arith.maximumf %15, %16 : vector<128x128xf32>
    %c1_10 = arith.constant 1 : index
    %c0_11 = arith.constant 0 : index
    %c0_12 = arith.constant 0 : index
    %18 = vector.load %arg1[%c1_10, %c0_11, %c0_12] : memref<2x128x128xbf16, #tpu.memory_space<vmem>>, vector<1x128x128xbf16>
    %19 = vector.shape_cast %18 : vector<1x128x128xbf16> to vector<128x128xbf16>
    %20 = arith.extf %19 : vector<128x128xbf16> to vector<128x128xf32>
    %c0_13 = arith.constant 0 : index
    %c0_14 = arith.constant 0 : index
    %c0_15 = arith.constant 0 : index
    %21 = vector.load %arg2[%c0_13, %c0_14, %c0_15] : memref<2x128x128xbf16, #tpu.memory_space<vmem>>, vector<1x128x128xbf16>
    %22 = vector.shape_cast %21 : vector<1x128x128xbf16> to vector<128x128xbf16>
    %23 = arith.extf %22 : vector<128x128xbf16> to vector<128x128xf32>
    %24 = arith.addf %20, %23 : vector<128x128xf32>
    %25 = arith.truncf %24 : vector<128x128xf32> to vector<128x128xbf16>
    %c0_16 = arith.constant 0 : index
    %c0_17 = arith.constant 0 : index
    %26 = vector.load %arg5[%c0_16, %c0_17] : memref<128x128xbf16, #tpu.memory_space<vmem>>, vector<128x128xbf16>
    %cst_18 = arith.constant dense<0.000000e+00> : vector<128x128xf32>
    %27 = tpu.matmul %25, %26, %cst_18 {dimension_numbers = #tpu.dot_dimension_numbers<[1], [0], [0], [1], [0, 0, 1, 1], [], []>} : vector<128x128xbf16>, vector<128x128xbf16>, vector<128x128xf32> -> vector<128x128xf32>
    %c0_19 = arith.constant 0 : index
    %c0_20 = arith.constant 0 : index
    %28 = vector.load %arg6[%c0_19, %c0_20] : memref<1x128xf32, #tpu.memory_space<vmem>>, vector<1x128xf32>
    %29 = vector.broadcast %28 : vector<1x128xf32> to vector<128x128xf32>
    %30 = arith.addf %27, %29 : vector<128x128xf32>
    %cst_21 = arith.constant 0.000000e+00 : f32
    %31 = vector.broadcast %cst_21 : f32 to vector<128x128xf32>
    %32 = arith.maximumf %30, %31 : vector<128x128xf32>
    %33 = arith.addf %17, %32 : vector<128x128xf32>
    %34 = arith.truncf %33 : vector<128x128xf32> to vector<128x128xbf16>
    %c0_22 = arith.constant 0 : index
    %c0_23 = arith.constant 0 : index
    %35 = vector.load %arg7[%c0_22, %c0_23] : memref<128x128xbf16, #tpu.memory_space<vmem>>, vector<128x128xbf16>
    %cst_24 = arith.constant dense<0.000000e+00> : vector<128x128xf32>
    %36 = tpu.matmul %34, %35, %cst_24 {dimension_numbers = #tpu.dot_dimension_numbers<[1], [0], [0], [1], [0, 0, 1, 1], [], []>} : vector<128x128xbf16>, vector<128x128xbf16>, vector<128x128xf32> -> vector<128x128xf32>
    %c0_25 = arith.constant 0 : index
    %c0_26 = arith.constant 0 : index
    %37 = vector.load %arg8[%c0_25, %c0_26] : memref<1x128xf32, #tpu.memory_space<vmem>>, vector<1x128xf32>
    %cst_27 = arith.constant 2.000000e+00 : f32
    %38 = vector.broadcast %cst_27 : f32 to vector<1x128xf32>
    %39 = arith.mulf %38, %37 : vector<1x128xf32>
    %40 = vector.broadcast %39 : vector<1x128xf32> to vector<128x128xf32>
    %41 = arith.addf %36, %40 : vector<128x128xf32>
    %42 = tpu.iota {dimensions = array<i32: 0>} : vector<16x128xi32>
    %c0_28 = arith.constant 0 : index
    %c0_29 = arith.constant 0 : index
    %43 = vector.load %arg3[%c0_28, %c0_29] : memref<1x128xi32, #tpu.memory_space<vmem>>, vector<1x128xi32>
    %44 = vector.broadcast %43 : vector<1x128xi32> to vector<16x128xi32>
    %45 = arith.cmpi eq, %42, %44 : vector<16x128xi32>
    %46 = arith.extui %45 : vector<16x128xi1> to vector<16x128xi32>
    %47 = arith.sitofp %46 : vector<16x128xi32> to vector<16x128xf32>
    %48 = arith.truncf %47 : vector<16x128xf32> to vector<16x128xbf16>
    %c0_30 = arith.constant 0 : index
    %c0_31 = arith.constant 0 : index
    %49 = vector.load %arg9[%c0_30, %c0_31] : memref<16x128xf32, #tpu.memory_space<vmem>>, vector<16x128xf32>
    %50 = arith.truncf %41 : vector<128x128xf32> to vector<128x128xbf16>
    %cst_32 = arith.constant dense<0.000000e+00> : vector<16x128xf32>
    %51 = tpu.matmul %48, %50, %cst_32 {dimension_numbers = #tpu.dot_dimension_numbers<[1], [0], [0], [1], [0, 0, 1, 1], [], []>} : vector<16x128xbf16>, vector<128x128xbf16>, vector<16x128xf32> -> vector<16x128xf32>
    %52 = arith.addf %49, %51 : vector<16x128xf32>
    %c0_33 = arith.constant 0 : index
    %c0_34 = arith.constant 0 : index
    %53 = vector.load %arg9[%c0_33, %c0_34] : memref<16x128xf32, #tpu.memory_space<vmem>>, vector<16x128xf32>
    tpu.vector_store %arg9[%c0_33, %c0_34], %52 {strides = array<i32>} : memref<16x128xf32, #tpu.memory_space<vmem>>, vector<16x128xf32>,
    return
  }
  func.func @transform_0(%arg0: i32) -> (i32, i32, i32) {
    %c0_i32 = arith.constant 0 : i32
    %c0_i32_0 = arith.constant 0 : i32
    %c0_i32_1 = arith.constant 0 : i32
    return %c0_i32, %arg0, %c0_i32_0 : i32, i32, i32
  }
  func.func @transform_1(%arg0: i32) -> (i32, i32, i32) {
    %c0_i32 = arith.constant 0 : i32
    %c0_i32_0 = arith.constant 0 : i32
    %c0_i32_1 = arith.constant 0 : i32
    return %c0_i32, %arg0, %c0_i32_0 : i32, i32, i32
  }
  func.func @transform_2(%arg0: i32) -> (i32, i32) {
    %c0_i32 = arith.constant 0 : i32
    %c0_i32_0 = arith.constant 0 : i32
    return %c0_i32, %arg0 : i32, i32
  }
  func.func @transform_3(%arg0: i32) -> (i32, i32) {
    %c0_i32 = arith.constant 0 : i32
    %c0_i32_0 = arith.constant 0 : i32
    %c0_i32_1 = arith.constant 0 : i32
    return %c0_i32, %c0_i32_0 : i32, i32
  }
  func.func @transform_4(%arg0: i32) -> (i32, i32) {
    %c0_i32 = arith.constant 0 : i32
    %c0_i32_0 = arith.constant 0 : i32
    %c0_i32_1 = arith.constant 0 : i32
    return %c0_i32, %c0_i32_0 : i32, i32
  }
  func.func @transform_5(%arg0: i32) -> (i32, i32) {
    %c0_i32 = arith.constant 0 : i32
    %c0_i32_0 = arith.constant 0 : i32
    %c0_i32_1 = arith.constant 0 : i32
    return %c0_i32, %c0_i32_0 : i32, i32
  }
  func.func @transform_6(%arg0: i32) -> (i32, i32) {
    %c0_i32 = arith.constant 0 : i32
    %c0_i32_0 = arith.constant 0 : i32
    %c0_i32_1 = arith.constant 0 : i32
    return %c0_i32, %c0_i32_0 : i32, i32
  }
  func.func @transform_7(%arg0: i32) -> (i32, i32) {
    %c0_i32 = arith.constant 0 : i32
    %c0_i32_0 = arith.constant 0 : i32
    %c0_i32_1 = arith.constant 0 : i32
    return %c0_i32, %c0_i32_0 : i32, i32
  }
  func.func @transform_8(%arg0: i32) -> (i32, i32) {
    %c0_i32 = arith.constant 0 : i32
    %c0_i32_0 = arith.constant 0 : i32
    %c0_i32_1 = arith.constant 0 : i32
    return %c0_i32, %c0_i32_0 : i32, i32
  }
}

module attributes {stable_mosaic.version = 11 : i64} {
  func.func @_gin_kernel(%arg0: i32, %arg1: memref<3x128x128xbf16, #tpu.memory_space<vmem>>, %arg2: memref<3x128x128xbf16, #tpu.memory_space<vmem>>, %arg3: memref<1x128xi32, #tpu.memory_space<vmem>>, %arg4: memref<16x128xf32, #tpu.memory_space<vmem>>, %arg5: memref<128x128xbf16, #tpu.memory_space<vmem>>, %arg6: memref<1x128xf32, #tpu.memory_space<vmem>>, %arg7: memref<128x128xbf16, #tpu.memory_space<vmem>>, %arg8: memref<1x128xf32, #tpu.memory_space<vmem>>, %arg9: memref<16x128xf32, #tpu.memory_space<vmem>>) attributes {dimension_semantics = [#tpu.dimension_semantics<arbitrary>], iteration_bounds = array<i64: 1>, scalar_prefetch = 0 : i64, scratch_operands = 0 : i64, tpu.core_type = #tpu.core_type<tc>, window_params = [{transform_indices = @transform_0, window_bounds = array<i64: 3, 128, 128>}, {transform_indices = @transform_1, window_bounds = array<i64: 3, 128, 128>}, {transform_indices = @transform_2, window_bounds = array<i64: 1, 128>}, {pipeline_mode = #tpu.pipeline_mode<synchronous>, transform_indices = @transform_3, window_bounds = array<i64: 16, 128>}, {pipeline_mode = #tpu.pipeline_mode<synchronous>, transform_indices = @transform_4, window_bounds = array<i64: 128, 128>}, {pipeline_mode = #tpu.pipeline_mode<synchronous>, transform_indices = @transform_5, window_bounds = array<i64: 1, 128>}, {pipeline_mode = #tpu.pipeline_mode<synchronous>, transform_indices = @transform_6, window_bounds = array<i64: 128, 128>}, {pipeline_mode = #tpu.pipeline_mode<synchronous>, transform_indices = @transform_7, window_bounds = array<i64: 1, 128>}, {pipeline_mode = #tpu.pipeline_mode<synchronous>, transform_indices = @transform_8, window_bounds = array<i64: 16, 128>}]} {
    %c0_i32 = arith.constant 0 : i32
    %0 = arith.cmpi eq, %arg0, %c0_i32 : i32
    %1 = arith.extui %0 : i1 to i32
    %c0_i32_0 = arith.constant 0 : i32
    %2 = arith.cmpi ne, %1, %c0_i32_0 : i32
    scf.if %2 {
      %c0_49 = arith.constant 0 : index
      %c0_50 = arith.constant 0 : index
      %74 = vector.load %arg4[%c0_49, %c0_50] : memref<16x128xf32, #tpu.memory_space<vmem>>, vector<16x128xf32>
      %c0_51 = arith.constant 0 : index
      %c0_52 = arith.constant 0 : index
      %75 = vector.load %arg9[%c0_51, %c0_52] : memref<16x128xf32, #tpu.memory_space<vmem>>, vector<16x128xf32>
      tpu.vector_store %arg9[%c0_51, %c0_52], %74 {strides = array<i32>} : memref<16x128xf32, #tpu.memory_space<vmem>>, vector<16x128xf32>,
    } else {
    }
    %c0 = arith.constant 0 : index
    %c0_1 = arith.constant 0 : index
    %c0_2 = arith.constant 0 : index
    %3 = vector.load %arg1[%c0, %c0_1, %c0_2] : memref<3x128x128xbf16, #tpu.memory_space<vmem>>, vector<1x128x128xbf16>
    %4 = vector.shape_cast %3 : vector<1x128x128xbf16> to vector<128x128xbf16>
    %5 = arith.extf %4 : vector<128x128xbf16> to vector<128x128xf32>
    %c1 = arith.constant 1 : index
    %c0_3 = arith.constant 0 : index
    %c0_4 = arith.constant 0 : index
    %6 = vector.load %arg2[%c1, %c0_3, %c0_4] : memref<3x128x128xbf16, #tpu.memory_space<vmem>>, vector<1x128x128xbf16>
    %7 = vector.shape_cast %6 : vector<1x128x128xbf16> to vector<128x128xbf16>
    %8 = arith.extf %7 : vector<128x128xbf16> to vector<128x128xf32>
    %9 = arith.addf %5, %8 : vector<128x128xf32>
    %10 = arith.truncf %9 : vector<128x128xf32> to vector<128x128xbf16>
    %c0_5 = arith.constant 0 : index
    %c0_6 = arith.constant 0 : index
    %11 = vector.load %arg5[%c0_5, %c0_6] : memref<128x128xbf16, #tpu.memory_space<vmem>>, vector<128x128xbf16>
    %cst = arith.constant dense<0.000000e+00> : vector<128x128xf32>
    %12 = tpu.matmul %10, %11, %cst {dimension_numbers = #tpu.dot_dimension_numbers<[1], [0], [0], [1], [0, 0, 1, 1], [], []>} : vector<128x128xbf16>, vector<128x128xbf16>, vector<128x128xf32> -> vector<128x128xf32>
    %c0_7 = arith.constant 0 : index
    %c0_8 = arith.constant 0 : index
    %13 = vector.load %arg6[%c0_7, %c0_8] : memref<1x128xf32, #tpu.memory_space<vmem>>, vector<1x128xf32>
    %14 = vector.broadcast %13 : vector<1x128xf32> to vector<128x128xf32>
    %15 = arith.addf %12, %14 : vector<128x128xf32>
    %cst_9 = arith.constant 0.000000e+00 : f32
    %16 = vector.broadcast %cst_9 : f32 to vector<128x128xf32>
    %17 = arith.maximumf %15, %16 : vector<128x128xf32>
    %c1_10 = arith.constant 1 : index
    %c0_11 = arith.constant 0 : index
    %c0_12 = arith.constant 0 : index
    %18 = vector.load %arg1[%c1_10, %c0_11, %c0_12] : memref<3x128x128xbf16, #tpu.memory_space<vmem>>, vector<1x128x128xbf16>
    %19 = vector.shape_cast %18 : vector<1x128x128xbf16> to vector<128x128xbf16>
    %20 = arith.extf %19 : vector<128x128xbf16> to vector<128x128xf32>
    %c0_13 = arith.constant 0 : index
    %c0_14 = arith.constant 0 : index
    %c0_15 = arith.constant 0 : index
    %21 = vector.load %arg2[%c0_13, %c0_14, %c0_15] : memref<3x128x128xbf16, #tpu.memory_space<vmem>>, vector<1x128x128xbf16>
    %22 = vector.shape_cast %21 : vector<1x128x128xbf16> to vector<128x128xbf16>
    %23 = arith.extf %22 : vector<128x128xbf16> to vector<128x128xf32>
    %24 = arith.addf %20, %23 : vector<128x128xf32>
    %c2 = arith.constant 2 : index
    %c0_16 = arith.constant 0 : index
    %c0_17 = arith.constant 0 : index
    %25 = vector.load %arg2[%c2, %c0_16, %c0_17] : memref<3x128x128xbf16, #tpu.memory_space<vmem>>, vector<1x128x128xbf16>
    %26 = vector.shape_cast %25 : vector<1x128x128xbf16> to vector<128x128xbf16>
    %27 = arith.extf %26 : vector<128x128xbf16> to vector<128x128xf32>
    %28 = arith.addf %24, %27 : vector<128x128xf32>
    %29 = arith.truncf %28 : vector<128x128xf32> to vector<128x128xbf16>
    %c0_18 = arith.constant 0 : index
    %c0_19 = arith.constant 0 : index
    %30 = vector.load %arg5[%c0_18, %c0_19] : memref<128x128xbf16, #tpu.memory_space<vmem>>, vector<128x128xbf16>
    %cst_20 = arith.constant dense<0.000000e+00> : vector<128x128xf32>
    %31 = tpu.matmul %29, %30, %cst_20 {dimension_numbers = #tpu.dot_dimension_numbers<[1], [0], [0], [1], [0, 0, 1, 1], [], []>} : vector<128x128xbf16>, vector<128x128xbf16>, vector<128x128xf32> -> vector<128x128xf32>
    %c0_21 = arith.constant 0 : index
    %c0_22 = arith.constant 0 : index
    %32 = vector.load %arg6[%c0_21, %c0_22] : memref<1x128xf32, #tpu.memory_space<vmem>>, vector<1x128xf32>
    %33 = vector.broadcast %32 : vector<1x128xf32> to vector<128x128xf32>
    %34 = arith.addf %31, %33 : vector<128x128xf32>
    %cst_23 = arith.constant 0.000000e+00 : f32
    %35 = vector.broadcast %cst_23 : f32 to vector<128x128xf32>
    %36 = arith.maximumf %34, %35 : vector<128x128xf32>
    %37 = arith.addf %17, %36 : vector<128x128xf32>
    %c2_24 = arith.constant 2 : index
    %c0_25 = arith.constant 0 : index
    %c0_26 = arith.constant 0 : index
    %38 = vector.load %arg1[%c2_24, %c0_25, %c0_26] : memref<3x128x128xbf16, #tpu.memory_space<vmem>>, vector<1x128x128xbf16>
    %39 = vector.shape_cast %38 : vector<1x128x128xbf16> to vector<128x128xbf16>
    %40 = arith.extf %39 : vector<128x128xbf16> to vector<128x128xf32>
    %c1_27 = arith.constant 1 : index
    %c0_28 = arith.constant 0 : index
    %c0_29 = arith.constant 0 : index
    %41 = vector.load %arg2[%c1_27, %c0_28, %c0_29] : memref<3x128x128xbf16, #tpu.memory_space<vmem>>, vector<1x128x128xbf16>
    %42 = vector.shape_cast %41 : vector<1x128x128xbf16> to vector<128x128xbf16>
    %43 = arith.extf %42 : vector<128x128xbf16> to vector<128x128xf32>
    %44 = arith.addf %40, %43 : vector<128x128xf32>
    %45 = arith.truncf %44 : vector<128x128xf32> to vector<128x128xbf16>
    %c0_30 = arith.constant 0 : index
    %c0_31 = arith.constant 0 : index
    %46 = vector.load %arg5[%c0_30, %c0_31] : memref<128x128xbf16, #tpu.memory_space<vmem>>, vector<128x128xbf16>
    %cst_32 = arith.constant dense<0.000000e+00> : vector<128x128xf32>
    %47 = tpu.matmul %45, %46, %cst_32 {dimension_numbers = #tpu.dot_dimension_numbers<[1], [0], [0], [1], [0, 0, 1, 1], [], []>} : vector<128x128xbf16>, vector<128x128xbf16>, vector<128x128xf32> -> vector<128x128xf32>
    %c0_33 = arith.constant 0 : index
    %c0_34 = arith.constant 0 : index
    %48 = vector.load %arg6[%c0_33, %c0_34] : memref<1x128xf32, #tpu.memory_space<vmem>>, vector<1x128xf32>
    %49 = vector.broadcast %48 : vector<1x128xf32> to vector<128x128xf32>
    %50 = arith.addf %47, %49 : vector<128x128xf32>
    %cst_35 = arith.constant 0.000000e+00 : f32
    %51 = vector.broadcast %cst_35 : f32 to vector<128x128xf32>
    %52 = arith.maximumf %50, %51 : vector<128x128xf32>
    %53 = arith.addf %37, %52 : vector<128x128xf32>
    %54 = arith.truncf %53 : vector<128x128xf32> to vector<128x128xbf16>
    %c0_36 = arith.constant 0 : index
    %c0_37 = arith.constant 0 : index
    %55 = vector.load %arg7[%c0_36, %c0_37] : memref<128x128xbf16, #tpu.memory_space<vmem>>, vector<128x128xbf16>
    %cst_38 = arith.constant dense<0.000000e+00> : vector<128x128xf32>
    %56 = tpu.matmul %54, %55, %cst_38 {dimension_numbers = #tpu.dot_dimension_numbers<[1], [0], [0], [1], [0, 0, 1, 1], [], []>} : vector<128x128xbf16>, vector<128x128xbf16>, vector<128x128xf32> -> vector<128x128xf32>
    %c0_39 = arith.constant 0 : index
    %c0_40 = arith.constant 0 : index
    %57 = vector.load %arg8[%c0_39, %c0_40] : memref<1x128xf32, #tpu.memory_space<vmem>>, vector<1x128xf32>
    %cst_41 = arith.constant 3.000000e+00 : f32
    %58 = vector.broadcast %cst_41 : f32 to vector<1x128xf32>
    %59 = arith.mulf %58, %57 : vector<1x128xf32>
    %60 = vector.broadcast %59 : vector<1x128xf32> to vector<128x128xf32>
    %61 = arith.addf %56, %60 : vector<128x128xf32>
    %62 = tpu.iota {dimensions = array<i32: 0>} : vector<16x128xi32>
    %c0_42 = arith.constant 0 : index
    %c0_43 = arith.constant 0 : index
    %63 = vector.load %arg3[%c0_42, %c0_43] : memref<1x128xi32, #tpu.memory_space<vmem>>, vector<1x128xi32>
    %64 = vector.broadcast %63 : vector<1x128xi32> to vector<16x128xi32>
    %65 = arith.cmpi eq, %62, %64 : vector<16x128xi32>
    %66 = arith.extui %65 : vector<16x128xi1> to vector<16x128xi32>
    %67 = arith.sitofp %66 : vector<16x128xi32> to vector<16x128xf32>
    %68 = arith.truncf %67 : vector<16x128xf32> to vector<16x128xbf16>
    %c0_44 = arith.constant 0 : index
    %c0_45 = arith.constant 0 : index
    %69 = vector.load %arg9[%c0_44, %c0_45] : memref<16x128xf32, #tpu.memory_space<vmem>>, vector<16x128xf32>
    %70 = arith.truncf %61 : vector<128x128xf32> to vector<128x128xbf16>
    %cst_46 = arith.constant dense<0.000000e+00> : vector<16x128xf32>
    %71 = tpu.matmul %68, %70, %cst_46 {dimension_numbers = #tpu.dot_dimension_numbers<[1], [0], [0], [1], [0, 0, 1, 1], [], []>} : vector<16x128xbf16>, vector<128x128xbf16>, vector<16x128xf32> -> vector<16x128xf32>
    %72 = arith.addf %69, %71 : vector<16x128xf32>
    %c0_47 = arith.constant 0 : index
    %c0_48 = arith.constant 0 : index
    %73 = vector.load %arg9[%c0_47, %c0_48] : memref<16x128xf32, #tpu.memory_space<vmem>>, vector<16x128xf32>
    tpu.vector_store %arg9[%c0_47, %c0_48], %72 {strides = array<i32>} : memref<16x128xf32, #tpu.memory_space<vmem>>, vector<16x128xf32>,
    return
  }
  func.func @transform_0(%arg0: i32) -> (i32, i32, i32) {
    %c0_i32 = arith.constant 0 : i32
    %c0_i32_0 = arith.constant 0 : i32
    %c0_i32_1 = arith.constant 0 : i32
    return %c0_i32, %arg0, %c0_i32_0 : i32, i32, i32
  }
  func.func @transform_1(%arg0: i32) -> (i32, i32, i32) {
    %c0_i32 = arith.constant 0 : i32
    %c0_i32_0 = arith.constant 0 : i32
    %c0_i32_1 = arith.constant 0 : i32
    return %c0_i32, %arg0, %c0_i32_0 : i32, i32, i32
  }
  func.func @transform_2(%arg0: i32) -> (i32, i32) {
    %c0_i32 = arith.constant 0 : i32
    %c0_i32_0 = arith.constant 0 : i32
    return %c0_i32, %arg0 : i32, i32
  }
  func.func @transform_3(%arg0: i32) -> (i32, i32) {
    %c0_i32 = arith.constant 0 : i32
    %c0_i32_0 = arith.constant 0 : i32
    %c0_i32_1 = arith.constant 0 : i32
    return %c0_i32, %c0_i32_0 : i32, i32
  }
  func.func @transform_4(%arg0: i32) -> (i32, i32) {
    %c0_i32 = arith.constant 0 : i32
    %c0_i32_0 = arith.constant 0 : i32
    %c0_i32_1 = arith.constant 0 : i32
    return %c0_i32, %c0_i32_0 : i32, i32
  }
  func.func @transform_5(%arg0: i32) -> (i32, i32) {
    %c0_i32 = arith.constant 0 : i32
    %c0_i32_0 = arith.constant 0 : i32
    %c0_i32_1 = arith.constant 0 : i32
    return %c0_i32, %c0_i32_0 : i32, i32
  }
  func.func @transform_6(%arg0: i32) -> (i32, i32) {
    %c0_i32 = arith.constant 0 : i32
    %c0_i32_0 = arith.constant 0 : i32
    %c0_i32_1 = arith.constant 0 : i32
    return %c0_i32, %c0_i32_0 : i32, i32
  }
  func.func @transform_7(%arg0: i32) -> (i32, i32) {
    %c0_i32 = arith.constant 0 : i32
    %c0_i32_0 = arith.constant 0 : i32
    %c0_i32_1 = arith.constant 0 : i32
    return %c0_i32, %c0_i32_0 : i32, i32
  }
  func.func @transform_8(%arg0: i32) -> (i32, i32) {
    %c0_i32 = arith.constant 0 : i32
    %c0_i32_0 = arith.constant 0 : i32
    %c0_i32_1 = arith.constant 0 : i32
    return %c0_i32, %c0_i32_0 : i32, i32
  }
}

module attributes {stable_mosaic.version = 11 : i64} {
  func.func @_final_kernel(%arg0: i32, %arg1: memref<16x128xf32, #tpu.memory_space<vmem>>, %arg2: memref<16x128xf32, #tpu.memory_space<vmem>>, %arg3: memref<128x128xbf16, #tpu.memory_space<vmem>>, %arg4: memref<1x128xf32, #tpu.memory_space<vmem>>, %arg5: memref<128x128xbf16, #tpu.memory_space<vmem>>, %arg6: memref<1x128xf32, #tpu.memory_space<vmem>>, %arg7: memref<16x128xf32, #tpu.memory_space<vmem>>) attributes {dimension_semantics = [#tpu.dimension_semantics<parallel>], iteration_bounds = array<i64: 1>, scalar_prefetch = 0 : i64, scratch_operands = 0 : i64, tpu.core_type = #tpu.core_type<tc>, window_params = [{transform_indices = @transform_0, window_bounds = array<i64: 16, 128>}, {transform_indices = @transform_1, window_bounds = array<i64: 16, 128>}, {pipeline_mode = #tpu.pipeline_mode<synchronous>, transform_indices = @transform_2, window_bounds = array<i64: 128, 128>}, {pipeline_mode = #tpu.pipeline_mode<synchronous>, transform_indices = @transform_3, window_bounds = array<i64: 1, 128>}, {pipeline_mode = #tpu.pipeline_mode<synchronous>, transform_indices = @transform_4, window_bounds = array<i64: 128, 128>}, {pipeline_mode = #tpu.pipeline_mode<synchronous>, transform_indices = @transform_5, window_bounds = array<i64: 1, 128>}, {transform_indices = @transform_6, window_bounds = array<i64: 16, 128>}]} {
    %c0 = arith.constant 0 : index
    %c0_0 = arith.constant 0 : index
    %0 = vector.load %arg1[%c0, %c0_0] : memref<16x128xf32, #tpu.memory_space<vmem>>, vector<16x128xf32>
    %c0_1 = arith.constant 0 : index
    %c0_2 = arith.constant 0 : index
    %1 = vector.load %arg2[%c0_1, %c0_2] : memref<16x128xf32, #tpu.memory_space<vmem>>, vector<16x128xf32>
    %2 = arith.addf %0, %1 : vector<16x128xf32>
    %3 = arith.truncf %2 : vector<16x128xf32> to vector<16x128xbf16>
    %c0_3 = arith.constant 0 : index
    %c0_4 = arith.constant 0 : index
    %4 = vector.load %arg3[%c0_3, %c0_4] : memref<128x128xbf16, #tpu.memory_space<vmem>>, vector<128x128xbf16>
    %cst = arith.constant dense<0.000000e+00> : vector<16x128xf32>
    %5 = tpu.matmul %3, %4, %cst {dimension_numbers = #tpu.dot_dimension_numbers<[1], [0], [0], [1], [0, 0, 1, 1], [], []>} : vector<16x128xbf16>, vector<128x128xbf16>, vector<16x128xf32> -> vector<16x128xf32>
    %c0_5 = arith.constant 0 : index
    %c0_6 = arith.constant 0 : index
    %6 = vector.load %arg4[%c0_5, %c0_6] : memref<1x128xf32, #tpu.memory_space<vmem>>, vector<1x128xf32>
    %7 = vector.broadcast %6 : vector<1x128xf32> to vector<16x128xf32>
    %8 = arith.addf %5, %7 : vector<16x128xf32>
    %cst_7 = arith.constant 0.000000e+00 : f32
    %9 = vector.broadcast %cst_7 : f32 to vector<16x128xf32>
    %10 = arith.maximumf %8, %9 : vector<16x128xf32>
    %11 = arith.truncf %10 : vector<16x128xf32> to vector<16x128xbf16>
    %c0_8 = arith.constant 0 : index
    %c0_9 = arith.constant 0 : index
    %12 = vector.load %arg5[%c0_8, %c0_9] : memref<128x128xbf16, #tpu.memory_space<vmem>>, vector<128x128xbf16>
    %cst_10 = arith.constant dense<0.000000e+00> : vector<16x128xf32>
    %13 = tpu.matmul %11, %12, %cst_10 {dimension_numbers = #tpu.dot_dimension_numbers<[1], [0], [0], [1], [0, 0, 1, 1], [], []>} : vector<16x128xbf16>, vector<128x128xbf16>, vector<16x128xf32> -> vector<16x128xf32>
    %c0_11 = arith.constant 0 : index
    %c0_12 = arith.constant 0 : index
    %14 = vector.load %arg6[%c0_11, %c0_12] : memref<1x128xf32, #tpu.memory_space<vmem>>, vector<1x128xf32>
    %15 = vector.broadcast %14 : vector<1x128xf32> to vector<16x128xf32>
    %16 = arith.addf %13, %15 : vector<16x128xf32>
    %c0_13 = arith.constant 0 : index
    %c0_14 = arith.constant 0 : index
    %17 = vector.load %arg7[%c0_13, %c0_14] : memref<16x128xf32, #tpu.memory_space<vmem>>, vector<16x128xf32>
    tpu.vector_store %arg7[%c0_13, %c0_14], %16 {strides = array<i32>} : memref<16x128xf32, #tpu.memory_space<vmem>>, vector<16x128xf32>,
    return
  }
  func.func @transform_0(%arg0: i32) -> (i32, i32) {
    %c0_i32 = arith.constant 0 : i32
    %c0_i32_0 = arith.constant 0 : i32
    return %arg0, %c0_i32 : i32, i32
  }
  func.func @transform_1(%arg0: i32) -> (i32, i32) {
    %c0_i32 = arith.constant 0 : i32
    %c0_i32_0 = arith.constant 0 : i32
    return %arg0, %c0_i32 : i32, i32
  }
  func.func @transform_2(%arg0: i32) -> (i32, i32) {
    %c0_i32 = arith.constant 0 : i32
    %c0_i32_0 = arith.constant 0 : i32
    %c0_i32_1 = arith.constant 0 : i32
    return %c0_i32, %c0_i32_0 : i32, i32
  }
  func.func @transform_3(%arg0: i32) -> (i32, i32) {
    %c0_i32 = arith.constant 0 : i32
    %c0_i32_0 = arith.constant 0 : i32
    %c0_i32_1 = arith.constant 0 : i32
    return %c0_i32, %c0_i32_0 : i32, i32
  }
  func.func @transform_4(%arg0: i32) -> (i32, i32) {
    %c0_i32 = arith.constant 0 : i32
    %c0_i32_0 = arith.constant 0 : i32
    %c0_i32_1 = arith.constant 0 : i32
    return %c0_i32, %c0_i32_0 : i32, i32
  }
  func.func @transform_5(%arg0: i32) -> (i32, i32) {
    %c0_i32 = arith.constant 0 : i32
    %c0_i32_0 = arith.constant 0 : i32
    %c0_i32_1 = arith.constant 0 : i32
    return %c0_i32, %c0_i32_0 : i32, i32
  }
  func.func @transform_6(%arg0: i32) -> (i32, i32) {
    %c0_i32 = arith.constant 0 : i32
    %c0_i32_0 = arith.constant 0 : i32
    return %arg0, %c0_i32 : i32, i32
  }
}

</mosaic_0001>

<llo_original>
// kernel: loopy_layer_forward.4
$region0: #{loopy_layer_forward.4}
  #allocation0 [shape = 'u32[]', space=smem, size = 0x4, offset = 0x4, fixed_abs, tag = 'smem constant byte address 0x4 - core index']
  #allocation1 [shape = 'u32[144,128]{1,0:T(1,128)}', space=vmem, size = 0x12000, scoped, tag = 'internal scratch']
  %s0 = inlined_call_operand.vmem [shape: bf16[128,128], index: 0, kind: input, shape index: {}]
  %s1 = inlined_call_operand.vmem [shape: s32[1,128], index: 1, kind: input, shape index: {}]
  %s2 = inlined_call_operand.vmem [shape: f32[16,128], index: 2, kind: input, shape index: {}, may-alias: {2,3}]
  %s3 = inlined_call_operand.vmem [shape: f32[16,128], index: 3, kind: output, shape index: {}, may-alias: {2,3}]
  %s4 = sld [smem:[#allocation0]]
  $region26: #{loopy_layer_forward.4} parent=0
    _
  %s6 = ssub.s32 1, %s4
  %s7 = scalar_select 0, %s6, %s4
  // Predicated region
  $region2: #{loopy_layer_forward.4} parent=0 // pred_check
    _
  $region3: #{loopy_layer_forward.4} parent=0 // pred_check_branch
    %9 = sbr.rel (0) target = $region5
  $region4: #{loopy_layer_forward.4} parent=0 // pred_region
    _
  $region5: #{loopy_layer_forward.4} parent=0 // pred_fallthru
    _
  // Predicated region
  $region6: #{loopy_layer_forward.4} parent=0 // pred_check
    _
  $region7: #{loopy_layer_forward.4} parent=0 // pred_check_branch
    %11 = sbr.rel (0) target = $region9
  $region8: #{loopy_layer_forward.4} parent=0 // pred_region
    _
  $region9: #{loopy_layer_forward.4} parent=0 // pred_fallthru
    _
  // Predicated region
  $region10: #{loopy_layer_forward.4} parent=0 // pred_check
    _
  $region11: #{loopy_layer_forward.4} parent=0 // pred_check_branch
    %13 = sbr.rel (0) target = $region13
  $region12: #{loopy_layer_forward.4} parent=0 // pred_region
    _
  $region13: #{loopy_layer_forward.4} parent=0 // pred_fallthru
    _
  %p15 = scmp.eq.s32.totalorder 0, 0
  // Predicated region
  $region14: #{loopy_layer_forward.4} parent=0 // pred_check
    %p16 = pneg %p15
  $region15: #{loopy_layer_forward.4} parent=0 // pred_check_branch
    %18 = sbr.rel (%p16) target = $region17
  $region16: #{loopy_layer_forward.4} parent=0 // pred_region
    %v19 = vld [vmem:[%s2] sm:$0xff]
    %v20 = vld [vmem:[%s2 + $0x8] sm:$0xff]
    %21 = vst [vmem:[%s3] sm:$0xff] %v19
    %22 = vst [vmem:[%s3 + $0x8] sm:$0xff] %v20
  $region17: #{loopy_layer_forward.4} parent=0 // pred_fallthru
    _
  %v23 = vlaneseq
  %v24 = vshrl.u32 %v23, 7
  %v25 = vadd.s32 %v24, 8
  %v26 = vld [vmem:[%s1] sm:$0x1]
  %v27 = vlaneseq
  %v28 = vshrl.u32 %v27, 7
  %v29 = vsub.s32 0, %v28
  %v30 = vrot.slane %v26, %v29
  %vm31 = vcmp.eq.s32.totalorder %v24, %v30
  %vm32 = vcmp.eq.s32.totalorder %v25, %v30
  %v33 = vsel %vm31, 1, 0
  %v34 = vsel %vm32, 1, 0
  %v35 = vcvt.s32.f32 %v33
  %v36 = vcvt.s32.f32 %v34
  %v37 = vpack.c.bf16 %v36, %v35
  %v38 = vld [vmem:[%s3] sm:$0xff]
  %v39 = vld [vmem:[%s3 + $0x8] sm:$0xff]
  %v40 = vld [vmem:[%s0] sm:$0xf]
  %v41 = vld [vmem:[%s0 + $0x4] sm:$0xf]
  %v42 = vld [vmem:[%s0 + $0x8] sm:$0xf]
  %v43 = vld [vmem:[%s0 + $0xc] sm:$0xf]
  %v44 = vld [vmem:[%s0 + $0x10] sm:$0xf]
  %v45 = vld [vmem:[%s0 + $0x14] sm:$0xf]
  %v46 = vld [vmem:[%s0 + $0x18] sm:$0xf]
  %v47 = vld [vmem:[%s0 + $0x1c] sm:$0xf]
  %v48 = vld [vmem:[%s0 + $0x20] sm:$0xf]
  %v49 = vld [vmem:[%s0 + $0x24] sm:$0xf]
  %v50 = vld [vmem:[%s0 + $0x28] sm:$0xf]
  %v51 = vld [vmem:[%s0 + $0x2c] sm:$0xf]
  %v52 = vld [vmem:[%s0 + $0x30] sm:$0xf]
  %v53 = vld [vmem:[%s0 + $0x34] sm:$0xf]
  %v54 = vld [vmem:[%s0 + $0x38] sm:$0xf]
  %v55 = vld [vmem:[%s0 + $0x3c] sm:$0xf]
  %v72 = vunpack.c.l.b16 %v40
  %v73 = vunpack.c.l.b16 %v41
  %v74 = vunpack.c.l.b16 %v42
  %v75 = vunpack.c.l.b16 %v43
  %v76 = vunpack.c.l.b16 %v44
  %v77 = vunpack.c.l.b16 %v45
  %v78 = vunpack.c.l.b16 %v46
  %v79 = vunpack.c.l.b16 %v47
  %v80 = vunpack.c.l.b16 %v48
  %v81 = vunpack.c.l.b16 %v49
  %v82 = vunpack.c.l.b16 %v50
  %v83 = vunpack.c.l.b16 %v51
  %v84 = vunpack.c.l.b16 %v52
  %v85 = vunpack.c.l.b16 %v53
  %v86 = vunpack.c.l.b16 %v54
  %v87 = vunpack.c.l.b16 %v55
  %v88 = vpack.c.b16 %v73, %v72
  %v89 = vpack.c.b16 %v75, %v74
  %v90 = vpack.c.b16 %v77, %v76
  %v91 = vpack.c.b16 %v79, %v78
  %v92 = vpack.c.b16 %v81, %v80
  %v93 = vpack.c.b16 %v83, %v82
  %v94 = vpack.c.b16 %v85, %v84
  %v95 = vpack.c.b16 %v87, %v86
  %104 = vmatprep.subr.bf16.mxu0 0
  %105 = vmatpush1.bf16.msra.mxu0 %v95
  %106 = vmatprep.subr.bf16.mxu0 0
  %107 = vmatpush1.bf16.msra.mxu0 %v94
  %108 = vmatprep.subr.bf16.mxu0 0
  %109 = vmatpush1.bf16.msra.mxu0 %v93
  %110 = vmatprep.subr.bf16.mxu0 0
  %111 = vmatpush1.bf16.msra.mxu0 %v92
  %112 = vmatprep.subr.bf16.mxu0 0
  %113 = vmatpush1.bf16.msra.mxu0 %v91
  %114 = vmatprep.subr.bf16.mxu0 0
  %115 = vmatpush1.bf16.msra.mxu0 %v90
  %116 = vmatprep.subr.bf16.mxu0 0
  %117 = vmatpush1.bf16.msra.mxu0 %v89
  %118 = vmatprep.subr.bf16.mxu0 0
  %119 = vmatpush1.bf16.msra.mxu0 %v88
  %120 = vmatprep.subr.bf16.mxu0 0
  %121 = vmatpush2.bf16.msra.mxu0 0
  %122 = vmatprep.subr.bf16.mxu0 0
  %123 = vmatpush2.bf16.msra.mxu0 0
  %124 = vmatprep.subr.bf16.mxu0 0
  %125 = vmatpush2.bf16.msra.mxu0 0
  %126 = vmatprep.subr.bf16.mxu0 0
  %127 = vmatpush2.bf16.msra.mxu0 0
  %128 = vmatprep.subr.bf16.mxu0 0
  %129 = vmatpush2.bf16.msra.mxu0 0
  %130 = vmatprep.subr.bf16.mxu0 0
  %131 = vmatpush2.bf16.msra.mxu0 0
  %132 = vmatprep.subr.bf16.mxu0 0
  %133 = vmatpush2.bf16.msra.mxu0 0
  %134 = vmatprep.subr.bf16.mxu0 0
  %135 = vmatpush2.bf16.msra.mxu0 0
  %136 = vmatprep.mubr.bf16.mxu0 0
  %137 = vmatmul.mubr.bf16.gmra.mxu0 %v37
  %v138 = vpop.f32.mrf.mxu0
  %v139 = vadd.f32 0.0, %v138
  %v140 = vpop.f32.mrf.mxu0
  %v141 = vpop.f32.mrf.mxu0
  %v142 = vadd.f32 0.0, %v141
  %v143 = vpop.f32.mrf.mxu0
  %144 = vdwg.mxu0
  %v145 = vadd.f32 %v38, %v139
  %v146 = vadd.f32 %v39, %v142
  %147 = vst [vmem:[%s3] sm:$0xff] %v145
  %148 = vst [vmem:[%s3 + $0x8] sm:$0xff] %v146
  // Predicated region
  $region18: #{loopy_layer_forward.4} parent=0 // pred_check
    _
  $region19: #{loopy_layer_forward.4} parent=0 // pred_check_branch
    %150 = sbr.rel (0) target = $region21
  $region20: #{loopy_layer_forward.4} parent=0 // pred_region
    _
  $region21: #{loopy_layer_forward.4} parent=0 // pred_fallthru
    _
  // Predicated region
  $region22: #{loopy_layer_forward.4} parent=0 // pred_check
    _
  $region23: #{loopy_layer_forward.4} parent=0 // pred_check_branch
    %152 = sbr.rel (0) target = $region25
  $region24: #{loopy_layer_forward.4} parent=0 // pred_region
    _
  $region25: #{loopy_layer_forward.4} parent=0 // pred_fallthru
    _

// kernel: loopy_layer_forward.5
$region0: #{loopy_layer_forward.5}
  #allocation0 [shape = 'u32[]', space=smem, size = 0x4, offset = 0x4, fixed_abs, tag = 'smem constant byte address 0x4 - core index']
  #allocation1 [shape = 'u32[144,128]{1,0:T(1,128)}', space=vmem, size = 0x12000, scoped, tag = 'internal scratch']
  %s0 = inlined_call_operand.vmem [shape: bf16[2,128,128], index: 0, kind: input, shape index: {}]
  %s1 = inlined_call_operand.vmem [shape: bf16[2,128,128], index: 1, kind: input, shape index: {}]
  %s2 = inlined_call_operand.vmem [shape: s32[1,128], index: 2, kind: input, shape index: {}]
  %s3 = inlined_call_operand.vmem [shape: f32[16,128], index: 3, kind: input, shape index: {}, may-alias: {3,8}]
  %s4 = inlined_call_operand.vmem [shape: bf16[128,128], index: 4, kind: input, shape index: {}]
  %s5 = inlined_call_operand.vmem [shape: f32[1,128], index: 5, kind: input, shape index: {}]
  %s6 = inlined_call_operand.vmem [shape: bf16[128,128], index: 6, kind: input, shape index: {}]
  %s7 = inlined_call_operand.vmem [shape: f32[1,128], index: 7, kind: input, shape index: {}]
  %s8 = inlined_call_operand.vmem [shape: f32[16,128], index: 8, kind: output, shape index: {}, may-alias: {3,8}]
  %s9 = sld [smem:[#allocation0]]
  $region46: #{loopy_layer_forward.5} parent=0
    _
  %s11 = ssub.s32 1, %s9
  %s12 = scalar_select 0, %s11, %s9
  // Predicated region
  $region2: #{loopy_layer_forward.5} parent=0 // pred_check
    _
  $region3: #{loopy_layer_forward.5} parent=0 // pred_check_branch
    %14 = sbr.rel (0) target = $region5
  $region4: #{loopy_layer_forward.5} parent=0 // pred_region
    _
  $region5: #{loopy_layer_forward.5} parent=0 // pred_fallthru
    _
  // Predicated region
  $region6: #{loopy_layer_forward.5} parent=0 // pred_check
    _
  $region7: #{loopy_layer_forward.5} parent=0 // pred_check_branch
    %16 = sbr.rel (0) target = $region9
  $region8: #{loopy_layer_forward.5} parent=0 // pred_region
    _
  $region9: #{loopy_layer_forward.5} parent=0 // pred_fallthru
    _
  // Predicated region
  $region10: #{loopy_layer_forward.5} parent=0 // pred_check
    _
  $region11: #{loopy_layer_forward.5} parent=0 // pred_check_branch
    %18 = sbr.rel (0) target = $region13
  $region12: #{loopy_layer_forward.5} parent=0 // pred_region
    _
  $region13: #{loopy_layer_forward.5} parent=0 // pred_fallthru
    _
  // Predicated region
  $region14: #{loopy_layer_forward.5} parent=0 // pred_check
    _
  $region15: #{loopy_layer_forward.5} parent=0 // pred_check_branch
    %20 = sbr.rel (0) target = $region17
  $region16: #{loopy_layer_forward.5} parent=0 // pred_region
    _
  $region17: #{loopy_layer_forward.5} parent=0 // pred_fallthru
    _
  // Predicated region
  $region18: #{loopy_layer_forward.5} parent=0 // pred_check
    _
  $region19: #{loopy_layer_forward.5} parent=0 // pred_check_branch
    %22 = sbr.rel (0) target = $region21
  $region20: #{loopy_layer_forward.5} parent=0 // pred_region
    _
  $region21: #{loopy_layer_forward.5} parent=0 // pred_fallthru
    _
  // Predicated region
  $region22: #{loopy_layer_forward.5} parent=0 // pred_check
    _
  $region23: #{loopy_layer_forward.5} parent=0 // pred_check_branch
    %24 = sbr.rel (0) target = $region25
  $region24: #{loopy_layer_forward.5} parent=0 // pred_region
    _
  $region25: #{loopy_layer_forward.5} parent=0 // pred_fallthru
    _
  // Predicated region
  $region26: #{loopy_layer_forward.5} parent=0 // pred_check
    _
  $region27: #{loopy_layer_forward.5} parent=0 // pred_check_branch
    %26 = sbr.rel (0) target = $region29
  $region28: #{loopy_layer_forward.5} parent=0 // pred_region
    _
  $region29: #{loopy_layer_forward.5} parent=0 // pred_fallthru
    _
  // Predicated region
  $region30: #{loopy_layer_forward.5} parent=0 // pred_check
    _
  $region31: #{loopy_layer_forward.5} parent=0 // pred_check_branch
    %28 = sbr.rel (0) target = $region33
  $region32: #{loopy_layer_forward.5} parent=0 // pred_region
    _
  $region33: #{loopy_layer_forward.5} parent=0 // pred_fallthru
    _
  %p30 = scmp.eq.s32.totalorder 0, 0
  // Predicated region
  $region34: #{loopy_layer_forward.5} parent=0 // pred_check
    %p31 = pneg %p30
  $region35: #{loopy_layer_forward.5} parent=0 // pred_check_branch
    %33 = sbr.rel (%p31) target = $region37
  $region36: #{loopy_layer_forward.5} parent=0 // pred_region
    %v34 = vld [vmem:[%s3] sm:$0xff]
    %v35 = vld [vmem:[%s3 + $0x8] sm:$0xff]
    %36 = vst [vmem:[%s8] sm:$0xff] %v34
    %37 = vst [vmem:[%s8 + $0x8] sm:$0xff] %v35
  $region37: #{loopy_layer_forward.5} parent=0 // pred_fallthru
    _
  %v38 = vld [vmem:[%s0] sm:$0xf]
  %v39 = vld [vmem:[%s0 + $0x4] sm:$0xf]
  %v40 = vld [vmem:[%s0 + $0x8] sm:$0xf]
  %v41 = vld [vmem:[%s0 + $0xc] sm:$0xf]
  %v42 = vld [vmem:[%s0 + $0x10] sm:$0xf]
  %v43 = vld [vmem:[%s0 + $0x14] sm:$0xf]
  %v44 = vld [vmem:[%s0 + $0x18] sm:$0xf]
  %v45 = vld [vmem:[%s0 + $0x1c] sm:$0xf]
  %v46 = vld [vmem:[%s0 + $0x20] sm:$0xf]
  %v47 = vld [vmem:[%s0 + $0x24] sm:$0xf]
  %v48 = vld [vmem:[%s0 + $0x28] sm:$0xf]
  %v49 = vld [vmem:[%s0 + $0x2c] sm:$0xf]
  %v50 = vld [vmem:[%s0 + $0x30] sm:$0xf]
  %v51 = vld [vmem:[%s0 + $0x34] sm:$0xf]
  %v52 = vld [vmem:[%s0 + $0x38] sm:$0xf]
  %v53 = vld [vmem:[%s0 + $0x3c] sm:$0xf]
  %v54 = vunpack.c.l.bf16 %v38
  %v55 = vunpack.c.l.bf16 %v39
  %v56 = vunpack.c.l.bf16 %v40
  %v57 = vunpack.c.l.bf16 %v41
  %v58 = vunpack.c.l.bf16 %v42
  %v59 = vunpack.c.l.bf16 %v43
  %v60 = vunpack.c.l.bf16 %v44
  %v61 = vunpack.c.l.bf16 %v45
  %v62 = vunpack.c.l.bf16 %v46
  %v63 = vunpack.c.l.bf16 %v47
  %v64 = vunpack.c.l.bf16 %v48
  %v65 = vunpack.c.l.bf16 %v49
  %v66 = vunpack.c.l.bf16 %v50
  %v67 = vunpack.c.l.bf16 %v51
  %v68 = vunpack.c.l.bf16 %v52
  %v69 = vunpack.c.l.bf16 %v53
  %s70 = scalar_lea.vmem %s1, 64
  %v71 = vld [vmem:[%s70] sm:$0xf]
  %v72 = vld [vmem:[%s70 + $0x4] sm:$0xf]
  %v73 = vld [vmem:[%s70 + $0x8] sm:$0xf]
  %v74 = vld [vmem:[%s70 + $0xc] sm:$0xf]
  %v75 = vld [vmem:[%s70 + $0x10] sm:$0xf]
  %v76 = vld [vmem:[%s70 + $0x14] sm:$0xf]
  %v77 = vld [vmem:[%s70 + $0x18] sm:$0xf]
  %v78 = vld [vmem:[%s70 + $0x1c] sm:$0xf]
  %v79 = vld [vmem:[%s70 + $0x20] sm:$0xf]
  %v80 = vld [vmem:[%s70 + $0x24] sm:$0xf]
  %v81 = vld [vmem:[%s70 + $0x28] sm:$0xf]
  %v82 = vld [vmem:[%s70 + $0x2c] sm:$0xf]
  %v83 = vld [vmem:[%s70 + $0x30] sm:$0xf]
  %v84 = vld [vmem:[%s70 + $0x34] sm:$0xf]
  %v85 = vld [vmem:[%s70 + $0x38] sm:$0xf]
  %v86 = vld [vmem:[%s70 + $0x3c] sm:$0xf]
  %v87 = vunpack.c.l.bf16 %v71
  %v88 = vunpack.c.l.bf16 %v72
  %v89 = vunpack.c.l.bf16 %v73
  %v90 = vunpack.c.l.bf16 %v74
  %v91 = vunpack.c.l.bf16 %v75
  %v92 = vunpack.c.l.bf16 %v76
  %v93 = vunpack.c.l.bf16 %v77
  %v94 = vunpack.c.l.bf16 %v78
  %v95 = vunpack.c.l.bf16 %v79
  %v96 = vunpack.c.l.bf16 %v80
  %v97 = vunpack.c.l.bf16 %v81
  %v98 = vunpack.c.l.bf16 %v82
  %v99 = vunpack.c.l.bf16 %v83
  %v100 = vunpack.c.l.bf16 %v84
  %v101 = vunpack.c.l.bf16 %v85
  %v102 = vunpack.c.l.bf16 %v86
  %v103 = vadd.f32 %v54, %v87
  %v104 = vadd.f32 %v55, %v88
  %v105 = vadd.f32 %v56, %v89
  %v106 = vadd.f32 %v57, %v90
  %v107 = vadd.f32 %v58, %v91
  %v108 = vadd.f32 %v59, %v92
  %v109 = vadd.f32 %v60, %v93
  %v110 = vadd.f32 %v61, %v94
  %v111 = vadd.f32 %v62, %v95
  %v112 = vadd.f32 %v63, %v96
  %v113 = vadd.f32 %v64, %v97
  %v114 = vadd.f32 %v65, %v98
  %v115 = vadd.f32 %v66, %v99
  %v116 = vadd.f32 %v67, %v100
  %v117 = vadd.f32 %v68, %v101
  %v118 = vadd.f32 %v69, %v102
  %v119 = vpack.c.bf16 %v104, %v103
  %v120 = vpack.c.bf16 %v106, %v105
  %v121 = vpack.c.bf16 %v108, %v107
  %v122 = vpack.c.bf16 %v110, %v109
  %v123 = vpack.c.bf16 %v112, %v111
  %v124 = vpack.c.bf16 %v114, %v113
  %v125 = vpack.c.bf16 %v116, %v115
  %v126 = vpack.c.bf16 %v118, %v117
  %v127 = vld [vmem:[%s4] sm:$0xf]
  %v128 = vld [vmem:[%s4 + $0x4] sm:$0xf]
  %v129 = vld [vmem:[%s4 + $0x8] sm:$0xf]
  %v130 = vld [vmem:[%s4 + $0xc] sm:$0xf]
  %v131 = vld [vmem:[%s4 + $0x10] sm:$0xf]
  %v132 = vld [vmem:[%s4 + $0x14] sm:$0xf]
  %v133 = vld [vmem:[%s4 + $0x18] sm:$0xf]
  %v134 = vld [vmem:[%s4 + $0x1c] sm:$0xf]
  %v135 = vld [vmem:[%s4 + $0x20] sm:$0xf]
  %v136 = vld [vmem:[%s4 + $0x24] sm:$0xf]
  %v137 = vld [vmem:[%s4 + $0x28] sm:$0xf]
  %v138 = vld [vmem:[%s4 + $0x2c] sm:$0xf]
  %v139 = vld [vmem:[%s4 + $0x30] sm:$0xf]
  %v140 = vld [vmem:[%s4 + $0x34] sm:$0xf]
  %v141 = vld [vmem:[%s4 + $0x38] sm:$0xf]
  %v142 = vld [vmem:[%s4 + $0x3c] sm:$0xf]
  %v143 = vld [vmem:[%s5] sm:$0x1]
  %v145 = vlaneseq
  %v146 = vshrl.u32 %v145, 7
  %v147 = vsub.s32 0, %v146
  %v148 = vrot.slane %v143, %v147
  %v166 = vunpack.c.l.b16 %v127
  %v167 = vunpack.c.l.b16 %v128
  %v168 = vunpack.c.l.b16 %v129
  %v169 = vunpack.c.l.b16 %v130
  %v170 = vunpack.c.l.b16 %v131
  %v171 = vunpack.c.l.b16 %v132
  %v172 = vunpack.c.l.b16 %v133
  %v173 = vunpack.c.l.b16 %v134
  %v174 = vunpack.c.l.b16 %v135
  %v175 = vunpack.c.l.b16 %v136
  %v176 = vunpack.c.l.b16 %v137
  %v177 = vunpack.c.l.b16 %v138
  %v178 = vunpack.c.l.b16 %v139
  %v179 = vunpack.c.l.b16 %v140
  %v180 = vunpack.c.l.b16 %v141
  %v181 = vunpack.c.l.b16 %v142
  %v182 = vpack.c.b16 %v167, %v166
  %v183 = vpack.c.b16 %v169, %v168
  %v184 = vpack.c.b16 %v171, %v170
  %v185 = vpack.c.b16 %v173, %v172
  %v186 = vpack.c.b16 %v175, %v174
  %v187 = vpack.c.b16 %v177, %v176
  %v188 = vpack.c.b16 %v179, %v178
  %v189 = vpack.c.b16 %v181, %v180
  %198 = vmatprep.subr.bf16.mxu0 0
  %199 = vmatpush1.bf16.msra.mxu0 %v189
  %200 = vmatprep.subr.bf16.mxu0 0
  %201 = vmatpush1.bf16.msra.mxu0 %v188
  %202 = vmatprep.subr.bf16.mxu0 0
  %203 = vmatpush1.bf16.msra.mxu0 %v187
  %204 = vmatprep.subr.bf16.mxu0 0
  %205 = vmatpush1.bf16.msra.mxu0 %v186
  %206 = vmatprep.subr.bf16.mxu0 0
  %207 = vmatpush1.bf16.msra.mxu0 %v185
  %208 = vmatprep.subr.bf16.mxu0 0
  %209 = vmatpush1.bf16.msra.mxu0 %v184
  %210 = vmatprep.subr.bf16.mxu0 0
  %211 = vmatpush1.bf16.msra.mxu0 %v183
  %212 = vmatprep.subr.bf16.mxu0 0
  %213 = vmatpush1.bf16.msra.mxu0 %v182
  %214 = vmatprep.subr.bf16.mxu0 0
  %215 = vmatpush2.bf16.msra.mxu0 0
  %216 = vmatprep.subr.bf16.mxu0 0
  %217 = vmatpush2.bf16.msra.mxu0 0
  %218 = vmatprep.subr.bf16.mxu0 0
  %219 = vmatpush2.bf16.msra.mxu0 0
  %220 = vmatprep.subr.bf16.mxu0 0
  %221 = vmatpush2.bf16.msra.mxu0 0
  %222 = vmatprep.subr.bf16.mxu0 0
  %223 = vmatpush2.bf16.msra.mxu0 0
  %224 = vmatprep.subr.bf16.mxu0 0
  %225 = vmatpush2.bf16.msra.mxu0 0
  %226 = vmatprep.subr.bf16.mxu0 0
  %227 = vmatpush2.bf16.msra.mxu0 0
  %228 = vmatprep.subr.bf16.mxu0 0
  %229 = vmatpush2.bf16.msra.mxu0 0
  %230 = vmatprep.mubr.bf16.mxu0 0
  %231 = vmatmul.mubr.bf16.gmra.mxu0 %v119
  %v232 = vpop.f32.mrf.mxu0
  %v233 = vadd.f32 %v148, %v232
  %v234 = vpop.f32.mrf.mxu0
  %v235 = vpop.f32.mrf.mxu0
  %v236 = vadd.f32 %v148, %v235
  %v237 = vpop.f32.mrf.mxu0
  %238 = vmatprep.mubr.bf16.mxu0 0
  %239 = vmatmul.mubr.bf16.gmra.mxu0 %v120
  %v240 = vpop.f32.mrf.mxu0
  %v241 = vadd.f32 %v148, %v240
  %v242 = vpop.f32.mrf.mxu0
  %v243 = vpop.f32.mrf.mxu0
  %v244 = vadd.f32 %v148, %v243
  %v245 = vpop.f32.mrf.mxu0
  %246 = vmatprep.mubr.bf16.mxu0 0
  %247 = vmatmul.mubr.bf16.gmra.mxu0 %v121
  %v248 = vpop.f32.mrf.mxu0
  %v249 = vadd.f32 %v148, %v248
  %v250 = vpop.f32.mrf.mxu0
  %v251 = vpop.f32.mrf.mxu0
  %v252 = vadd.f32 %v148, %v251
  %v253 = vpop.f32.mrf.mxu0
  %254 = vmatprep.mubr.bf16.mxu0 0
  %255 = vmatmul.mubr.bf16.gmra.mxu0 %v122
  %v256 = vpop.f32.mrf.mxu0
  %v257 = vadd.f32 %v148, %v256
  %v258 = vpop.f32.mrf.mxu0
  %v259 = vpop.f32.mrf.mxu0
  %v260 = vadd.f32 %v148, %v259
  %v261 = vpop.f32.mrf.mxu0
  %262 = vmatprep.mubr.bf16.mxu0 0
  %263 = vmatmul.mubr.bf16.gmra.mxu0 %v123
  %v264 = vpop.f32.mrf.mxu0
  %v265 = vadd.f32 %v148, %v264
  %v266 = vpop.f32.mrf.mxu0
  %v267 = vpop.f32.mrf.mxu0
  %v268 = vadd.f32 %v148, %v267
  %v269 = vpop.f32.mrf.mxu0
  %270 = vmatprep.mubr.bf16.mxu0 0
  %271 = vmatmul.mubr.bf16.gmra.mxu0 %v124
  %v272 = vpop.f32.mrf.mxu0
  %v273 = vadd.f32 %v148, %v272
  %v274 = vpop.f32.mrf.mxu0
  %v275 = vpop.f32.mrf.mxu0
  %v276 = vadd.f32 %v148, %v275
  %v277 = vpop.f32.mrf.mxu0
  %278 = vmatprep.mubr.bf16.mxu0 0
  %279 = vmatmul.mubr.bf16.gmra.mxu0 %v125
  %v280 = vpop.f32.mrf.mxu0
  %v281 = vadd.f32 %v148, %v280
  %v282 = vpop.f32.mrf.mxu0
  %v283 = vpop.f32.mrf.mxu0
  %v284 = vadd.f32 %v148, %v283
  %v285 = vpop.f32.mrf.mxu0
  %286 = vmatprep.mubr.bf16.mxu0 0
  %287 = vmatmul.mubr.bf16.gmra.mxu0 %v126
  %v288 = vpop.f32.mrf.mxu0
  %v289 = vadd.f32 %v148, %v288
  %v290 = vpop.f32.mrf.mxu0
  %v291 = vpop.f32.mrf.mxu0
  %v292 = vadd.f32 %v148, %v291
  %v293 = vpop.f32.mrf.mxu0
  %294 = vdwg.mxu0
  %v295 = vmax.f32 %v233, 0.0
  %v296 = vmax.f32 %v236, 0.0
  %v297 = vmax.f32 %v241, 0.0
  %v298 = vmax.f32 %v244, 0.0
  %v299 = vmax.f32 %v249, 0.0
  %v300 = vmax.f32 %v252, 0.0
  %v301 = vmax.f32 %v257, 0.0
  %v302 = vmax.f32 %v260, 0.0
  %v303 = vmax.f32 %v265, 0.0
  %v304 = vmax.f32 %v268, 0.0
  %v305 = vmax.f32 %v273, 0.0
  %v306 = vmax.f32 %v276, 0.0
  %v307 = vmax.f32 %v281, 0.0
  %v308 = vmax.f32 %v284, 0.0
  %v309 = vmax.f32 %v289, 0.0
  %v310 = vmax.f32 %v292, 0.0
  %s311 = scalar_lea.vmem %s0, 64
  %v312 = vld [vmem:[%s311] sm:$0xf]
  %v313 = vld [vmem:[%s311 + $0x4] sm:$0xf]
  %v314 = vld [vmem:[%s311 + $0x8] sm:$0xf]
  %v315 = vld [vmem:[%s311 + $0xc] sm:$0xf]
  %v316 = vld [vmem:[%s311 + $0x10] sm:$0xf]
  %v317 = vld [vmem:[%s311 + $0x14] sm:$0xf]
  %v318 = vld [vmem:[%s311 + $0x18] sm:$0xf]
  %v319 = vld [vmem:[%s311 + $0x1c] sm:$0xf]
  %v320 = vld [vmem:[%s311 + $0x20] sm:$0xf]
  %v321 = vld [vmem:[%s311 + $0x24] sm:$0xf]
  %v322 = vld [vmem:[%s311 + $0x28] sm:$0xf]
  %v323 = vld [vmem:[%s311 + $0x2c] sm:$0xf]
  %v324 = vld [vmem:[%s311 + $0x30] sm:$0xf]
  %v325 = vld [vmem:[%s311 + $0x34] sm:$0xf]
  %v326 = vld [vmem:[%s311 + $0x38] sm:$0xf]
  %v327 = vld [vmem:[%s311 + $0x3c] sm:$0xf]
  %v328 = vunpack.c.l.bf16 %v312
  %v329 = vunpack.c.l.bf16 %v313
  %v330 = vunpack.c.l.bf16 %v314
  %v331 = vunpack.c.l.bf16 %v315
  %v332 = vunpack.c.l.bf16 %v316
  %v333 = vunpack.c.l.bf16 %v317
  %v334 = vunpack.c.l.bf16 %v318
  %v335 = vunpack.c.l.bf16 %v319
  %v336 = vunpack.c.l.bf16 %v320
  %v337 = vunpack.c.l.bf16 %v321
  %v338 = vunpack.c.l.bf16 %v322
  %v339 = vunpack.c.l.bf16 %v323
  %v340 = vunpack.c.l.bf16 %v324
  %v341 = vunpack.c.l.bf16 %v325
  %v342 = vunpack.c.l.bf16 %v326
  %v343 = vunpack.c.l.bf16 %v327
  %v344 = vld [vmem:[%s1] sm:$0xf]
  %v345 = vld [vmem:[%s1 + $0x4] sm:$0xf]
  %v346 = vld [vmem:[%s1 + $0x8] sm:$0xf]
  %v347 = vld [vmem:[%s1 + $0xc] sm:$0xf]
  %v348 = vld [vmem:[%s1 + $0x10] sm:$0xf]
  %v349 = vld [vmem:[%s1 + $0x14] sm:$0xf]
  %v350 = vld [vmem:[%s1 + $0x18] sm:$0xf]
  %v351 = vld [vmem:[%s1 + $0x1c] sm:$0xf]
  %v352 = vld [vmem:[%s1 + $0x20] sm:$0xf]
  %v353 = vld [vmem:[%s1 + $0x24] sm:$0xf]
  %v354 = vld [vmem:[%s1 + $0x28] sm:$0xf]
  %v355 = vld [vmem:[%s1 + $0x2c] sm:$0xf]
  %v356 = vld [vmem:[%s1 + $0x30] sm:$0xf]
  %v357 = vld [vmem:[%s1 + $0x34] sm:$0xf]
  %v358 = vld [vmem:[%s1 + $0x38] sm:$0xf]
  %v359 = vld [vmem:[%s1 + $0x3c] sm:$0xf]
  %v360 = vunpack.c.l.bf16 %v344
  %v361 = vunpack.c.l.bf16 %v345
  %v362 = vunpack.c.l.bf16 %v346
  %v363 = vunpack.c.l.bf16 %v347
  %v364 = vunpack.c.l.bf16 %v348
  %v365 = vunpack.c.l.bf16 %v349
  %v366 = vunpack.c.l.bf16 %v350
  %v367 = vunpack.c.l.bf16 %v351
  %v368 = vunpack.c.l.bf16 %v352
  %v369 = vunpack.c.l.bf16 %v353
  %v370 = vunpack.c.l.bf16 %v354
  %v371 = vunpack.c.l.bf16 %v355
  %v372 = vunpack.c.l.bf16 %v356
  %v373 = vunpack.c.l.bf16 %v357
  %v374 = vunpack.c.l.bf16 %v358
  %v375 = vunpack.c.l.bf16 %v359
  %v376 = vadd.f32 %v328, %v360
  %v377 = vadd.f32 %v329, %v361
  %v378 = vadd.f32 %v330, %v362
  %v379 = vadd.f32 %v331, %v363
  %v380 = vadd.f32 %v332, %v364
  %v381 = vadd.f32 %v333, %v365
  %v382 = vadd.f32 %v334, %v366
  %v383 = vadd.f32 %v335, %v367
  %v384 = vadd.f32 %v336, %v368
  %v385 = vadd.f32 %v337, %v369
  %v386 = vadd.f32 %v338, %v370
  %v387 = vadd.f32 %v339, %v371
  %v388 = vadd.f32 %v340, %v372
  %v389 = vadd.f32 %v341, %v373
  %v390 = vadd.f32 %v342, %v374
  %v391 = vadd.f32 %v343, %v375
  %v392 = vpack.c.bf16 %v377, %v376
  %v393 = vpack.c.bf16 %v379, %v378
  %v394 = vpack.c.bf16 %v381, %v380
  %v395 = vpack.c.bf16 %v383, %v382
  %v396 = vpack.c.bf16 %v385, %v384
  %v397 = vpack.c.bf16 %v387, %v386
  %v398 = vpack.c.bf16 %v389, %v388
  %v399 = vpack.c.bf16 %v391, %v390
  %400 = vmatprep.subr.bf16.mxu0 0
  %401 = vmatpush1.bf16.msra.mxu0 %v189
  %402 = vmatprep.subr.bf16.mxu0 0
  %403 = vmatpush1.bf16.msra.mxu0 %v188
  %404 = vmatprep.subr.bf16.mxu0 0
  %405 = vmatpush1.bf16.msra.mxu0 %v187
  %406 = vmatprep.subr.bf16.mxu0 0
  %407 = vmatpush1.bf16.msra.mxu0 %v186
  %408 = vmatprep.subr.bf16.mxu0 0
  %409 = vmatpush1.bf16.msra.mxu0 %v185
  %410 = vmatprep.subr.bf16.mxu0 0
  %411 = vmatpush1.bf16.msra.mxu0 %v184
  %412 = vmatprep.subr.bf16.mxu0 0
  %413 = vmatpush1.bf16.msra.mxu0 %v183
  %414 = vmatprep.subr.bf16.mxu0 0
  %415 = vmatpush1.bf16.msra.mxu0 %v182
  %416 = vmatprep.subr.bf16.mxu0 0
  %417 = vmatpush2.bf16.msra.mxu0 0
  %418 = vmatprep.subr.bf16.mxu0 0
  %419 = vmatpush2.bf16.msra.mxu0 0
  %420 = vmatprep.subr.bf16.mxu0 0
  %421 = vmatpush2.bf16.msra.mxu0 0
  %422 = vmatprep.subr.bf16.mxu0 0
  %423 = vmatpush2.bf16.msra.mxu0 0
  %424 = vmatprep.subr.bf16.mxu0 0
  %425 = vmatpush2.bf16.msra.mxu0 0
  %426 = vmatprep.subr.bf16.mxu0 0
  %427 = vmatpush2.bf16.msra.mxu0 0
  %428 = vmatprep.subr.bf16.mxu0 0
  %429 = vmatpush2.bf16.msra.mxu0 0
  %430 = vmatprep.subr.bf16.mxu0 0
  %431 = vmatpush2.bf16.msra.mxu0 0
  %432 = vmatprep.mubr.bf16.mxu0 0
  %433 = vmatmul.mubr.bf16.gmra.mxu0 %v392
  %v434 = vpop.f32.mrf.mxu0
  %v435 = vadd.f32 %v148, %v434
  %v436 = vpop.f32.mrf.mxu0
  %v437 = vpop.f32.mrf.mxu0
  %v438 = vadd.f32 %v148, %v437
  %v439 = vpop.f32.mrf.mxu0
  %440 = vmatprep.mubr.bf16.mxu0 0
  %441 = vmatmul.mubr.bf16.gmra.mxu0 %v393
  %v442 = vpop.f32.mrf.mxu0
  %v443 = vadd.f32 %v148, %v442
  %v444 = vpop.f32.mrf.mxu0
  %v445 = vpop.f32.mrf.mxu0
  %v446 = vadd.f32 %v148, %v445
  %v447 = vpop.f32.mrf.mxu0
  %448 = vmatprep.mubr.bf16.mxu0 0
  %449 = vmatmul.mubr.bf16.gmra.mxu0 %v394
  %v450 = vpop.f32.mrf.mxu0
  %v451 = vadd.f32 %v148, %v450
  %v452 = vpop.f32.mrf.mxu0
  %v453 = vpop.f32.mrf.mxu0
  %v454 = vadd.f32 %v148, %v453
  %v455 = vpop.f32.mrf.mxu0
  %456 = vmatprep.mubr.bf16.mxu0 0
  %457 = vmatmul.mubr.bf16.gmra.mxu0 %v395
  %v458 = vpop.f32.mrf.mxu0
  %v459 = vadd.f32 %v148, %v458
  %v460 = vpop.f32.mrf.mxu0
  %v461 = vpop.f32.mrf.mxu0
  %v462 = vadd.f32 %v148, %v461
  %v463 = vpop.f32.mrf.mxu0
  %464 = vmatprep.mubr.bf16.mxu0 0
  %465 = vmatmul.mubr.bf16.gmra.mxu0 %v396
  %v466 = vpop.f32.mrf.mxu0
  %v467 = vadd.f32 %v148, %v466
  %v468 = vpop.f32.mrf.mxu0
  %v469 = vpop.f32.mrf.mxu0
  %v470 = vadd.f32 %v148, %v469
  %v471 = vpop.f32.mrf.mxu0
  %472 = vmatprep.mubr.bf16.mxu0 0
  %473 = vmatmul.mubr.bf16.gmra.mxu0 %v397
  %v474 = vpop.f32.mrf.mxu0
  %v475 = vadd.f32 %v148, %v474
  %v476 = vpop.f32.mrf.mxu0
  %v477 = vpop.f32.mrf.mxu0
  %v478 = vadd.f32 %v148, %v477
  %v479 = vpop.f32.mrf.mxu0
  %480 = vmatprep.mubr.bf16.mxu0 0
  %481 = vmatmul.mubr.bf16.gmra.mxu0 %v398
  %v482 = vpop.f32.mrf.mxu0
  %v483 = vadd.f32 %v148, %v482
  %v484 = vpop.f32.mrf.mxu0
  %v485 = vpop.f32.mrf.mxu0
  %v486 = vadd.f32 %v148, %v485
  %v487 = vpop.f32.mrf.mxu0
  %488 = vmatprep.mubr.bf16.mxu0 0
  %489 = vmatmul.mubr.bf16.gmra.mxu0 %v399
  %v490 = vpop.f32.mrf.mxu0
  %v491 = vadd.f32 %v148, %v490
  %v492 = vpop.f32.mrf.mxu0
  %v493 = vpop.f32.mrf.mxu0
  %v494 = vadd.f32 %v148, %v493
  %v495 = vpop.f32.mrf.mxu0
  %496 = vdwg.mxu0
  %v497 = vmax.f32 %v435, 0.0
  %v498 = vmax.f32 %v438, 0.0
  %v499 = vmax.f32 %v443, 0.0
  %v500 = vmax.f32 %v446, 0.0
  %v501 = vmax.f32 %v451, 0.0
  %v502 = vmax.f32 %v454, 0.0
  %v503 = vmax.f32 %v459, 0.0
  %v504 = vmax.f32 %v462, 0.0
  %v505 = vmax.f32 %v467, 0.0
  %v506 = vmax.f32 %v470, 0.0
  %v507 = vmax.f32 %v475, 0.0
  %v508 = vmax.f32 %v478, 0.0
  %v509 = vmax.f32 %v483, 0.0
  %v510 = vmax.f32 %v486, 0.0
  %v511 = vmax.f32 %v491, 0.0
  %v512 = vmax.f32 %v494, 0.0
  %v513 = vadd.f32 %v295, %v497
  %v514 = vadd.f32 %v296, %v498
  %v515 = vadd.f32 %v297, %v499
  %v516 = vadd.f32 %v298, %v500
  %v517 = vadd.f32 %v299, %v501
  %v518 = vadd.f32 %v300, %v502
  %v519 = vadd.f32 %v301, %v503
  %v520 = vadd.f32 %v302, %v504
  %v521 = vadd.f32 %v303, %v505
  %v522 = vadd.f32 %v304, %v506
  %v523 = vadd.f32 %v305, %v507
  %v524 = vadd.f32 %v306, %v508
  %v525 = vadd.f32 %v307, %v509
  %v526 = vadd.f32 %v308, %v510
  %v527 = vadd.f32 %v309, %v511
  %v528 = vadd.f32 %v310, %v512
  %v529 = vpack.c.bf16 %v514, %v513
  %v530 = vpack.c.bf16 %v516, %v515
  %v531 = vpack.c.bf16 %v518, %v517
  %v532 = vpack.c.bf16 %v520, %v519
  %v533 = vpack.c.bf16 %v522, %v521
  %v534 = vpack.c.bf16 %v524, %v523
  %v535 = vpack.c.bf16 %v526, %v525
  %v536 = vpack.c.bf16 %v528, %v527
  %v537 = vld [vmem:[%s6] sm:$0xf]
  %v538 = vld [vmem:[%s6 + $0x4] sm:$0xf]
  %v539 = vld [vmem:[%s6 + $0x8] sm:$0xf]
  %v540 = vld [vmem:[%s6 + $0xc] sm:$0xf]
  %v541 = vld [vmem:[%s6 + $0x10] sm:$0xf]
  %v542 = vld [vmem:[%s6 + $0x14] sm:$0xf]
  %v543 = vld [vmem:[%s6 + $0x18] sm:$0xf]
  %v544 = vld [vmem:[%s6 + $0x1c] sm:$0xf]
  %v545 = vld [vmem:[%s6 + $0x20] sm:$0xf]
  %v546 = vld [vmem:[%s6 + $0x24] sm:$0xf]
  %v547 = vld [vmem:[%s6 + $0x28] sm:$0xf]
  %v548 = vld [vmem:[%s6 + $0x2c] sm:$0xf]
  %v549 = vld [vmem:[%s6 + $0x30] sm:$0xf]
  %v550 = vld [vmem:[%s6 + $0x34] sm:$0xf]
  %v551 = vld [vmem:[%s6 + $0x38] sm:$0xf]
  %v552 = vld [vmem:[%s6 + $0x3c] sm:$0xf]
  %v553 = vld [vmem:[%s7] sm:$0x1]
  %v554 = vmul.f32 %v553, 2.0
  %v556 = vlaneseq
  %v557 = vshrl.u32 %v556, 7
  %v558 = vsub.s32 0, %v557
  %v559 = vrot.slane %v554, %v558
  %v577 = vunpack.c.l.b16 %v537
  %v578 = vunpack.c.l.b16 %v538
  %v579 = vunpack.c.l.b16 %v539
  %v580 = vunpack.c.l.b16 %v540
  %v581 = vunpack.c.l.b16 %v541
  %v582 = vunpack.c.l.b16 %v542
  %v583 = vunpack.c.l.b16 %v543
  %v584 = vunpack.c.l.b16 %v544
  %v585 = vunpack.c.l.b16 %v545
  %v586 = vunpack.c.l.b16 %v546
  %v587 = vunpack.c.l.b16 %v547
  %v588 = vunpack.c.l.b16 %v548
  %v589 = vunpack.c.l.b16 %v549
  %v590 = vunpack.c.l.b16 %v550
  %v591 = vunpack.c.l.b16 %v551
  %v592 = vunpack.c.l.b16 %v552
  %v593 = vpack.c.b16 %v578, %v577
  %v594 = vpack.c.b16 %v580, %v579
  %v595 = vpack.c.b16 %v582, %v581
  %v596 = vpack.c.b16 %v584, %v583
  %v597 = vpack.c.b16 %v586, %v585
  %v598 = vpack.c.b16 %v588, %v587
  %v599 = vpack.c.b16 %v590, %v589
  %v600 = vpack.c.b16 %v592, %v591
  %609 = vmatprep.subr.bf16.mxu0 0
  %610 = vmatpush1.bf16.msra.mxu0 %v600
  %611 = vmatprep.subr.bf16.mxu0 0
  %612 = vmatpush1.bf16.msra.mxu0 %v599
  %613 = vmatprep.subr.bf16.mxu0 0
  %614 = vmatpush1.bf16.msra.mxu0 %v598
  %615 = vmatprep.subr.bf16.mxu0 0
  %616 = vmatpush1.bf16.msra.mxu0 %v597
  %617 = vmatprep.subr.bf16.mxu0 0
  %618 = vmatpush1.bf16.msra.mxu0 %v596
  %619 = vmatprep.subr.bf16.mxu0 0
  %620 = vmatpush1.bf16.msra.mxu0 %v595
  %621 = vmatprep.subr.bf16.mxu0 0
  %622 = vmatpush1.bf16.msra.mxu0 %v594
  %623 = vmatprep.subr.bf16.mxu0 0
  %624 = vmatpush1.bf16.msra.mxu0 %v593
  %625 = vmatprep.subr.bf16.mxu0 0
  %626 = vmatpush2.bf16.msra.mxu0 0
  %627 = vmatprep.subr.bf16.mxu0 0
  %628 = vmatpush2.bf16.msra.mxu0 0
  %629 = vmatprep.subr.bf16.mxu0 0
  %630 = vmatpush2.bf16.msra.mxu0 0
  %631 = vmatprep.subr.bf16.mxu0 0
  %632 = vmatpush2.bf16.msra.mxu0 0
  %633 = vmatprep.subr.bf16.mxu0 0
  %634 = vmatpush2.bf16.msra.mxu0 0
  %635 = vmatprep.subr.bf16.mxu0 0
  %636 = vmatpush2.bf16.msra.mxu0 0
  %637 = vmatprep.subr.bf16.mxu0 0
  %638 = vmatpush2.bf16.msra.mxu0 0
  %639 = vmatprep.subr.bf16.mxu0 0
  %640 = vmatpush2.bf16.msra.mxu0 0
  %641 = vmatprep.mubr.bf16.mxu0 0
  %642 = vmatmul.mubr.bf16.gmra.mxu0 %v529
  %v643 = vpop.f32.mrf.mxu0
  %v644 = vadd.f32 %v559, %v643
  %v645 = vpop.f32.mrf.mxu0
  %v646 = vpop.f32.mrf.mxu0
  %v647 = vadd.f32 %v559, %v646
  %v648 = vpop.f32.mrf.mxu0
  %649 = vmatprep.mubr.bf16.mxu0 0
  %650 = vmatmul.mubr.bf16.gmra.mxu0 %v530
  %v651 = vpop.f32.mrf.mxu0
  %v652 = vadd.f32 %v559, %v651
  %v653 = vpop.f32.mrf.mxu0
  %v654 = vpop.f32.mrf.mxu0
  %v655 = vadd.f32 %v559, %v654
  %v656 = vpop.f32.mrf.mxu0
  %657 = vmatprep.mubr.bf16.mxu0 0
  %658 = vmatmul.mubr.bf16.gmra.mxu0 %v531
  %v659 = vpop.f32.mrf.mxu0
  %v660 = vadd.f32 %v559, %v659
  %v661 = vpop.f32.mrf.mxu0
  %v662 = vpop.f32.mrf.mxu0
  %v663 = vadd.f32 %v559, %v662
  %v664 = vpop.f32.mrf.mxu0
  %665 = vmatprep.mubr.bf16.mxu0 0
  %666 = vmatmul.mubr.bf16.gmra.mxu0 %v532
  %v667 = vpop.f32.mrf.mxu0
  %v668 = vadd.f32 %v559, %v667
  %v669 = vpop.f32.mrf.mxu0
  %v670 = vpop.f32.mrf.mxu0
  %v671 = vadd.f32 %v559, %v670
  %v672 = vpop.f32.mrf.mxu0
  %673 = vmatprep.mubr.bf16.mxu0 0
  %674 = vmatmul.mubr.bf16.gmra.mxu0 %v533
  %v675 = vpop.f32.mrf.mxu0
  %v676 = vadd.f32 %v559, %v675
  %v677 = vpop.f32.mrf.mxu0
  %v678 = vpop.f32.mrf.mxu0
  %v679 = vadd.f32 %v559, %v678
  %v680 = vpop.f32.mrf.mxu0
  %681 = vmatprep.mubr.bf16.mxu0 0
  %682 = vmatmul.mubr.bf16.gmra.mxu0 %v534
  %v683 = vpop.f32.mrf.mxu0
  %v684 = vadd.f32 %v559, %v683
  %v685 = vpop.f32.mrf.mxu0
  %v686 = vpop.f32.mrf.mxu0
  %v687 = vadd.f32 %v559, %v686
  %v688 = vpop.f32.mrf.mxu0
  %689 = vmatprep.mubr.bf16.mxu0 0
  %690 = vmatmul.mubr.bf16.gmra.mxu0 %v535
  %v691 = vpop.f32.mrf.mxu0
  %v692 = vadd.f32 %v559, %v691
  %v693 = vpop.f32.mrf.mxu0
  %v694 = vpop.f32.mrf.mxu0
  %v695 = vadd.f32 %v559, %v694
  %v696 = vpop.f32.mrf.mxu0
  %697 = vmatprep.mubr.bf16.mxu0 0
  %698 = vmatmul.mubr.bf16.gmra.mxu0 %v536
  %v699 = vpop.f32.mrf.mxu0
  %v700 = vadd.f32 %v559, %v699
  %v701 = vpop.f32.mrf.mxu0
  %v702 = vpop.f32.mrf.mxu0
  %v703 = vadd.f32 %v559, %v702
  %v704 = vpop.f32.mrf.mxu0
  %705 = vdwg.mxu0
  %v706 = vlaneseq
  %v707 = vshrl.u32 %v706, 7
  %v708 = vadd.s32 %v707, 8
  %v709 = vld [vmem:[%s2] sm:$0x1]
  %v710 = vlaneseq
  %v711 = vshrl.u32 %v710, 7
  %v712 = vsub.s32 0, %v711
  %v713 = vrot.slane %v709, %v712
  %vm714 = vcmp.eq.s32.totalorder %v707, %v713
  %vm715 = vcmp.eq.s32.totalorder %v708, %v713
  %v716 = vsel %vm714, 1, 0
  %v717 = vsel %vm715, 1, 0
  %v718 = vcvt.s32.f32 %v716
  %v719 = vcvt.s32.f32 %v717
  %v720 = vpack.c.bf16 %v719, %v718
  %v721 = vld [vmem:[%s8] sm:$0xff]
  %v722 = vld [vmem:[%s8 + $0x8] sm:$0xff]
  %v723 = vpack.c.bf16 %v647, %v644
  %v724 = vpack.c.bf16 %v655, %v652
  %v725 = vpack.c.bf16 %v663, %v660
  %v726 = vpack.c.bf16 %v671, %v668
  %v727 = vpack.c.bf16 %v679, %v676
  %v728 = vpack.c.bf16 %v687, %v684
  %v729 = vpack.c.bf16 %v695, %v692
  %v730 = vpack.c.bf16 %v703, %v700
  %731 = vmatprep.subr.bf16.mxu0 0
  %732 = vmatpush1.bf16.msra.mxu0 %v730
  %733 = vmatprep.subr.bf16.mxu0 0
  %734 = vmatpush1.bf16.msra.mxu0 %v729
  %735 = vmatprep.subr.bf16.mxu0 0
  %736 = vmatpush1.bf16.msra.mxu0 %v728
  %737 = vmatprep.subr.bf16.mxu0 0
  %738 = vmatpush1.bf16.msra.mxu0 %v727
  %739 = vmatprep.subr.bf16.mxu0 0
  %740 = vmatpush1.bf16.msra.mxu0 %v726
  %741 = vmatprep.subr.bf16.mxu0 0
  %742 = vmatpush1.bf16.msra.mxu0 %v725
  %743 = vmatprep.subr.bf16.mxu0 0
  %744 = vmatpush1.bf16.msra.mxu0 %v724
  %745 = vmatprep.subr.bf16.mxu0 0
  %746 = vmatpush1.bf16.msra.mxu0 %v723
  %747 = vmatprep.subr.bf16.mxu0 0
  %748 = vmatpush2.bf16.msra.mxu0 0
  %749 = vmatprep.subr.bf16.mxu0 0
  %750 = vmatpush2.bf16.msra.mxu0 0
  %751 = vmatprep.subr.bf16.mxu0 0
  %752 = vmatpush2.bf16.msra.mxu0 0
  %753 = vmatprep.subr.bf16.mxu0 0
  %754 = vmatpush2.bf16.msra.mxu0 0
  %755 = vmatprep.subr.bf16.mxu0 0
  %756 = vmatpush2.bf16.msra.mxu0 0
  %757 = vmatprep.subr.bf16.mxu0 0
  %758 = vmatpush2.bf16.msra.mxu0 0
  %759 = vmatprep.subr.bf16.mxu0 0
  %760 = vmatpush2.bf16.msra.mxu0 0
  %761 = vmatprep.subr.bf16.mxu0 0
  %762 = vmatpush2.bf16.msra.mxu0 0
  %763 = vmatprep.mubr.bf16.mxu0 0
  %764 = vmatmul.mubr.bf16.gmra.mxu0 %v720
  %v765 = vpop.f32.mrf.mxu0
  %v766 = vadd.f32 0.0, %v765
  %v767 = vpop.f32.mrf.mxu0
  %v768 = vpop.f32.mrf.mxu0
  %v769 = vadd.f32 0.0, %v768
  %v770 = vpop.f32.mrf.mxu0
  %771 = vdwg.mxu0
  %v772 = vadd.f32 %v721, %v766
  %v773 = vadd.f32 %v722, %v769
  %774 = vst [vmem:[%s8] sm:$0xff] %v772
  %775 = vst [vmem:[%s8 + $0x8] sm:$0xff] %v773
  // Predicated region
  $region38: #{loopy_layer_forward.5} parent=0 // pred_check
    _
  $region39: #{loopy_layer_forward.5} parent=0 // pred_check_branch
    %777 = sbr.rel (0) target = $region41
  $region40: #{loopy_layer_forward.5} parent=0 // pred_region
    _
  $region41: #{loopy_layer_forward.5} parent=0 // pred_fallthru
    _
  // Predicated region
  $region42: #{loopy_layer_forward.5} parent=0 // pred_check
    _
  $region43: #{loopy_layer_forward.5} parent=0 // pred_check_branch
    %779 = sbr.rel (0) target = $region45
  $region44: #{loopy_layer_forward.5} parent=0 // pred_region
    _
  $region45: #{loopy_layer_forward.5} parent=0 // pred_fallthru
    _

// kernel: loopy_layer_forward.7
$region0: #{loopy_layer_forward.7}
  #allocation0 [shape = 'u32[]', space=smem, size = 0x4, offset = 0x4, fixed_abs, tag = 'smem constant byte address 0x4 - core index']
  #allocation1 [shape = 'u32[144,128]{1,0:T(1,128)}', space=vmem, size = 0x12000, scoped, tag = 'internal scratch']
  %s0 = inlined_call_operand.vmem [shape: f32[16,128], index: 0, kind: input, shape index: {}]
  %s1 = inlined_call_operand.vmem [shape: f32[16,128], index: 1, kind: input, shape index: {}]
  %s2 = inlined_call_operand.vmem [shape: bf16[128,128], index: 2, kind: input, shape index: {}]
  %s3 = inlined_call_operand.vmem [shape: f32[1,128], index: 3, kind: input, shape index: {}]
  %s4 = inlined_call_operand.vmem [shape: bf16[128,128], index: 4, kind: input, shape index: {}]
  %s5 = inlined_call_operand.vmem [shape: f32[1,128], index: 5, kind: input, shape index: {}]
  %s6 = inlined_call_operand.hbm [shape: f32[16,128], index: 6, kind: output, shape index: {}]
  %s7 = sld [smem:[#allocation0]]
  $region34: #{loopy_layer_forward.7} parent=0
    _
  %s9 = ssub.s32 1, %s7
  %s10 = scalar_select 0, %s9, %s7
  $region1: #{loopy_layer_forward.7} parent=0
    #allocation2 [shape = 'u8[8192]{0}', space=vmem, size = 0x2000, scoped, tag = 'output window, operand 0, single buffered']
    #allocation3 [shape = 's32[1]{0}', space=sflag, size = 0x4, scoped, tag = 'scoped memory for loopy_layer_forward.7']
    %11 = vsyncpa [#allocation3], 0
    // Predicated region
    $region2: #{loopy_layer_forward.7} parent=1 // pred_check
      _
    $region3: #{loopy_layer_forward.7} parent=1 // pred_check_branch
      %13 = sbr.rel (0) target = $region5
    $region4: #{loopy_layer_forward.7} parent=1 // pred_region
      _
    $region5: #{loopy_layer_forward.7} parent=1 // pred_fallthru
      _
    // Predicated region
    $region6: #{loopy_layer_forward.7} parent=1 // pred_check
      _
    $region7: #{loopy_layer_forward.7} parent=1 // pred_check_branch
      %15 = sbr.rel (0) target = $region9
    $region8: #{loopy_layer_forward.7} parent=1 // pred_region
      _
    $region9: #{loopy_layer_forward.7} parent=1 // pred_fallthru
      _
    // Predicated region
    $region10: #{loopy_layer_forward.7} parent=1 // pred_check
      _
    $region11: #{loopy_layer_forward.7} parent=1 // pred_check_branch
      %17 = sbr.rel (0) target = $region13
    $region12: #{loopy_layer_forward.7} parent=1 // pred_region
      _
    $region13: #{loopy_layer_forward.7} parent=1 // pred_fallthru
      _
    // Predicated region
    $region14: #{loopy_layer_forward.7} parent=1 // pred_check
      _
    $region15: #{loopy_layer_forward.7} parent=1 // pred_check_branch
      %19 = sbr.rel (0) target = $region17
    $region16: #{loopy_layer_forward.7} parent=1 // pred_region
      _
    $region17: #{loopy_layer_forward.7} parent=1 // pred_fallthru
      _
    // Predicated region
    $region18: #{loopy_layer_forward.7} parent=1 // pred_check
      _
    $region19: #{loopy_layer_forward.7} parent=1 // pred_check_branch
      %21 = sbr.rel (0) target = $region21
    $region20: #{loopy_layer_forward.7} parent=1 // pred_region
      _
    $region21: #{loopy_layer_forward.7} parent=1 // pred_fallthru
      _
    // Predicated region
    $region22: #{loopy_layer_forward.7} parent=1 // pred_check
      _
    $region23: #{loopy_layer_forward.7} parent=1 // pred_check_branch
      %23 = sbr.rel (0) target = $region25
    $region24: #{loopy_layer_forward.7} parent=1 // pred_region
      _
    $region25: #{loopy_layer_forward.7} parent=1 // pred_fallthru
      _
    %v25 = vld [vmem:[%s0] sm:$0xff]
    %v26 = vld [vmem:[%s0 + $0x8] sm:$0xff]
    %v27 = vld [vmem:[%s1] sm:$0xff]
    %v28 = vld [vmem:[%s1 + $0x8] sm:$0xff]
    %v29 = vadd.f32 %v25, %v27
    %v30 = vadd.f32 %v26, %v28
    %v31 = vpack.c.bf16 %v30, %v29
    %v32 = vld [vmem:[%s2] sm:$0xf]
    %v33 = vld [vmem:[%s2 + $0x4] sm:$0xf]
    %v34 = vld [vmem:[%s2 + $0x8] sm:$0xf]
    %v35 = vld [vmem:[%s2 + $0xc] sm:$0xf]
    %v36 = vld [vmem:[%s2 + $0x10] sm:$0xf]
    %v37 = vld [vmem:[%s2 + $0x14] sm:$0xf]
    %v38 = vld [vmem:[%s2 + $0x18] sm:$0xf]
    %v39 = vld [vmem:[%s2 + $0x1c] sm:$0xf]
    %v40 = vld [vmem:[%s2 + $0x20] sm:$0xf]
    %v41 = vld [vmem:[%s2 + $0x24] sm:$0xf]
    %v42 = vld [vmem:[%s2 + $0x28] sm:$0xf]
    %v43 = vld [vmem:[%s2 + $0x2c] sm:$0xf]
    %v44 = vld [vmem:[%s2 + $0x30] sm:$0xf]
    %v45 = vld [vmem:[%s2 + $0x34] sm:$0xf]
    %v46 = vld [vmem:[%s2 + $0x38] sm:$0xf]
    %v47 = vld [vmem:[%s2 + $0x3c] sm:$0xf]
    %v48 = vld [vmem:[%s3] sm:$0x1]
    %v50 = vlaneseq
    %v51 = vshrl.u32 %v50, 7
    %v52 = vsub.s32 0, %v51
    %v53 = vrot.slane %v48, %v52
    %v71 = vunpack.c.l.b16 %v32
    %v72 = vunpack.c.l.b16 %v33
    %v73 = vunpack.c.l.b16 %v34
    %v74 = vunpack.c.l.b16 %v35
    %v75 = vunpack.c.l.b16 %v36
    %v76 = vunpack.c.l.b16 %v37
    %v77 = vunpack.c.l.b16 %v38
    %v78 = vunpack.c.l.b16 %v39
    %v79 = vunpack.c.l.b16 %v40
    %v80 = vunpack.c.l.b16 %v41
    %v81 = vunpack.c.l.b16 %v42
    %v82 = vunpack.c.l.b16 %v43
    %v83 = vunpack.c.l.b16 %v44
    %v84 = vunpack.c.l.b16 %v45
    %v85 = vunpack.c.l.b16 %v46
    %v86 = vunpack.c.l.b16 %v47
    %v87 = vpack.c.b16 %v72, %v71
    %v88 = vpack.c.b16 %v74, %v73
    %v89 = vpack.c.b16 %v76, %v75
    %v90 = vpack.c.b16 %v78, %v77
    %v91 = vpack.c.b16 %v80, %v79
    %v92 = vpack.c.b16 %v82, %v81
    %v93 = vpack.c.b16 %v84, %v83
    %v94 = vpack.c.b16 %v86, %v85
    %103 = vmatprep.subr.bf16.mxu0 0
    %104 = vmatpush1.bf16.msra.mxu0 %v94
    %105 = vmatprep.subr.bf16.mxu0 0
    %106 = vmatpush1.bf16.msra.mxu0 %v93
    %107 = vmatprep.subr.bf16.mxu0 0
    %108 = vmatpush1.bf16.msra.mxu0 %v92
    %109 = vmatprep.subr.bf16.mxu0 0
    %110 = vmatpush1.bf16.msra.mxu0 %v91
    %111 = vmatprep.subr.bf16.mxu0 0
    %112 = vmatpush1.bf16.msra.mxu0 %v90
    %113 = vmatprep.subr.bf16.mxu0 0
    %114 = vmatpush1.bf16.msra.mxu0 %v89
    %115 = vmatprep.subr.bf16.mxu0 0
    %116 = vmatpush1.bf16.msra.mxu0 %v88
    %117 = vmatprep.subr.bf16.mxu0 0
    %118 = vmatpush1.bf16.msra.mxu0 %v87
    %119 = vmatprep.subr.bf16.mxu0 0
    %120 = vmatpush2.bf16.msra.mxu0 0
    %121 = vmatprep.subr.bf16.mxu0 0
    %122 = vmatpush2.bf16.msra.mxu0 0
    %123 = vmatprep.subr.bf16.mxu0 0
    %124 = vmatpush2.bf16.msra.mxu0 0
    %125 = vmatprep.subr.bf16.mxu0 0
    %126 = vmatpush2.bf16.msra.mxu0 0
    %127 = vmatprep.subr.bf16.mxu0 0
    %128 = vmatpush2.bf16.msra.mxu0 0
    %129 = vmatprep.subr.bf16.mxu0 0
    %130 = vmatpush2.bf16.msra.mxu0 0
    %131 = vmatprep.subr.bf16.mxu0 0
    %132 = vmatpush2.bf16.msra.mxu0 0
    %133 = vmatprep.subr.bf16.mxu0 0
    %134 = vmatpush2.bf16.msra.mxu0 0
    %135 = vmatprep.mubr.bf16.mxu0 0
    %136 = vmatmul.mubr.bf16.gmra.mxu0 %v31
    %v137 = vpop.f32.mrf.mxu0
    %v138 = vadd.f32 %v53, %v137
    %v139 = vpop.f32.mrf.mxu0
    %v140 = vpop.f32.mrf.mxu0
    %v141 = vadd.f32 %v53, %v140
    %v142 = vpop.f32.mrf.mxu0
    %143 = vdwg.mxu0
    %v144 = vmax.f32 %v138, 0.0
    %v145 = vmax.f32 %v141, 0.0
    %v146 = vpack.c.bf16 %v145, %v144
    %v147 = vld [vmem:[%s4] sm:$0xf]
    %v148 = vld [vmem:[%s4 + $0x4] sm:$0xf]
    %v149 = vld [vmem:[%s4 + $0x8] sm:$0xf]
    %v150 = vld [vmem:[%s4 + $0xc] sm:$0xf]
    %v151 = vld [vmem:[%s4 + $0x10] sm:$0xf]
    %v152 = vld [vmem:[%s4 + $0x14] sm:$0xf]
    %v153 = vld [vmem:[%s4 + $0x18] sm:$0xf]
    %v154 = vld [vmem:[%s4 + $0x1c] sm:$0xf]
    %v155 = vld [vmem:[%s4 + $0x20] sm:$0xf]
    %v156 = vld [vmem:[%s4 + $0x24] sm:$0xf]
    %v157 = vld [vmem:[%s4 + $0x28] sm:$0xf]
    %v158 = vld [vmem:[%s4 + $0x2c] sm:$0xf]
    %v159 = vld [vmem:[%s4 + $0x30] sm:$0xf]
    %v160 = vld [vmem:[%s4 + $0x34] sm:$0xf]
    %v161 = vld [vmem:[%s4 + $0x38] sm:$0xf]
    %v162 = vld [vmem:[%s4 + $0x3c] sm:$0xf]
    %v163 = vld [vmem:[%s5] sm:$0x1]
    %v165 = vlaneseq
    %v166 = vshrl.u32 %v165, 7
    %v167 = vsub.s32 0, %v166
    %v168 = vrot.slane %v163, %v167
    %v186 = vunpack.c.l.b16 %v147
    %v187 = vunpack.c.l.b16 %v148
    %v188 = vunpack.c.l.b16 %v149
    %v189 = vunpack.c.l.b16 %v150
    %v190 = vunpack.c.l.b16 %v151
    %v191 = vunpack.c.l.b16 %v152
    %v192 = vunpack.c.l.b16 %v153
    %v193 = vunpack.c.l.b16 %v154
    %v194 = vunpack.c.l.b16 %v155
    %v195 = vunpack.c.l.b16 %v156
    %v196 = vunpack.c.l.b16 %v157
    %v197 = vunpack.c.l.b16 %v158
    %v198 = vunpack.c.l.b16 %v159
    %v199 = vunpack.c.l.b16 %v160
    %v200 = vunpack.c.l.b16 %v161
    %v201 = vunpack.c.l.b16 %v162
    %v202 = vpack.c.b16 %v187, %v186
    %v203 = vpack.c.b16 %v189, %v188
    %v204 = vpack.c.b16 %v191, %v190
    %v205 = vpack.c.b16 %v193, %v192
    %v206 = vpack.c.b16 %v195, %v194
    %v207 = vpack.c.b16 %v197, %v196
    %v208 = vpack.c.b16 %v199, %v198
    %v209 = vpack.c.b16 %v201, %v200
    %218 = vmatprep.subr.bf16.mxu0 0
    %219 = vmatpush1.bf16.msra.mxu0 %v209
    %220 = vmatprep.subr.bf16.mxu0 0
    %221 = vmatpush1.bf16.msra.mxu0 %v208
    %222 = vmatprep.subr.bf16.mxu0 0
    %223 = vmatpush1.bf16.msra.mxu0 %v207
    %224 = vmatprep.subr.bf16.mxu0 0
    %225 = vmatpush1.bf16.msra.mxu0 %v206
    %226 = vmatprep.subr.bf16.mxu0 0
    %227 = vmatpush1.bf16.msra.mxu0 %v205
    %228 = vmatprep.subr.bf16.mxu0 0
    %229 = vmatpush1.bf16.msra.mxu0 %v204
    %230 = vmatprep.subr.bf16.mxu0 0
    %231 = vmatpush1.bf16.msra.mxu0 %v203
    %232 = vmatprep.subr.bf16.mxu0 0
    %233 = vmatpush1.bf16.msra.mxu0 %v202
    %234 = vmatprep.subr.bf16.mxu0 0
    %235 = vmatpush2.bf16.msra.mxu0 0
    %236 = vmatprep.subr.bf16.mxu0 0
    %237 = vmatpush2.bf16.msra.mxu0 0
    %238 = vmatprep.subr.bf16.mxu0 0
    %239 = vmatpush2.bf16.msra.mxu0 0
    %240 = vmatprep.subr.bf16.mxu0 0
    %241 = vmatpush2.bf16.msra.mxu0 0
    %242 = vmatprep.subr.bf16.mxu0 0
    %243 = vmatpush2.bf16.msra.mxu0 0
    %244 = vmatprep.subr.bf16.mxu0 0
    %245 = vmatpush2.bf16.msra.mxu0 0
    %246 = vmatprep.subr.bf16.mxu0 0
    %247 = vmatpush2.bf16.msra.mxu0 0
    %248 = vmatprep.subr.bf16.mxu0 0
    %249 = vmatpush2.bf16.msra.mxu0 0
    %250 = vmatprep.mubr.bf16.mxu0 0
    %251 = vmatmul.mubr.bf16.gmra.mxu0 %v146
    %v252 = vpop.f32.mrf.mxu0
    %v253 = vadd.f32 %v168, %v252
    %v254 = vpop.f32.mrf.mxu0
    %v255 = vpop.f32.mrf.mxu0
    %v256 = vadd.f32 %v168, %v255
    %v257 = vpop.f32.mrf.mxu0
    %258 = vdwg.mxu0
    %259 = vst [vmem:[#allocation2] sm:$0xff] %v253
    %260 = vst [vmem:[#allocation2 + $0x8] sm:$0xff] %v256
    // Predicated region
    $region26: #{loopy_layer_forward.7} parent=1 // pred_check
      _
    $region27: #{loopy_layer_forward.7} parent=1 // pred_check_branch
      %262 = sbr.rel (0) target = $region29
    $region28: #{loopy_layer_forward.7} parent=1 // pred_region
      %s264 = ssub.s32 256, 256
      %265 = vsyncadd [#allocation3], %s264
      %s266 = sshll.u32 [#allocation2], 4
      %s267 = int_to_ptr.vmem [resolvable:$true] %s266
      %272 = dma.vmem_to_hbm [thread:$0]  %s267, 256, %s6, [#allocation3], 128, 128, 8
    $region29: #{loopy_layer_forward.7} parent=1 // pred_fallthru
      _
    // Predicated region
    $region30: #{loopy_layer_forward.7} parent=1 // pred_check
      _
    $region31: #{loopy_layer_forward.7} parent=1 // pred_check_branch
      %274 = sbr.rel (0) target = $region33
    $region32: #{loopy_layer_forward.7} parent=1 // pred_region
      %275 = dma.done [#allocation3], 256
    $region33: #{loopy_layer_forward.7} parent=1 // pred_fallthru
      _
    %276 = vsyncpa [#allocation3], 1

// kernel: loopy_layer_forward.6
$region0: #{loopy_layer_forward.6}
  #allocation0 [shape = 'u32[]', space=smem, size = 0x4, offset = 0x4, fixed_abs, tag = 'smem constant byte address 0x4 - core index']
  #allocation1 [shape = 'u32[144,128]{1,0:T(1,128)}', space=vmem, size = 0x12000, scoped, tag = 'internal scratch']
  %s0 = inlined_call_operand.vmem [shape: bf16[3,128,128], index: 0, kind: input, shape index: {}]
  %s1 = inlined_call_operand.vmem [shape: bf16[3,128,128], index: 1, kind: input, shape index: {}]
  %s2 = inlined_call_operand.vmem [shape: s32[1,128], index: 2, kind: input, shape index: {}]
  %s3 = inlined_call_operand.vmem [shape: f32[16,128], index: 3, kind: input, shape index: {}, may-alias: {3,8}]
  %s4 = inlined_call_operand.vmem [shape: bf16[128,128], index: 4, kind: input, shape index: {}]
  %s5 = inlined_call_operand.vmem [shape: f32[1,128], index: 5, kind: input, shape index: {}]
  %s6 = inlined_call_operand.vmem [shape: bf16[128,128], index: 6, kind: input, shape index: {}]
  %s7 = inlined_call_operand.vmem [shape: f32[1,128], index: 7, kind: input, shape index: {}]
  %s8 = inlined_call_operand.vmem [shape: f32[16,128], index: 8, kind: output, shape index: {}, may-alias: {3,8}]
  %s9 = sld [smem:[#allocation0]]
  $region46: #{loopy_layer_forward.6} parent=0
    _
  %s11 = ssub.s32 1, %s9
  %s12 = scalar_select 0, %s11, %s9
  // Predicated region
  $region2: #{loopy_layer_forward.6} parent=0 // pred_check
    _
  $region3: #{loopy_layer_forward.6} parent=0 // pred_check_branch
    %14 = sbr.rel (0) target = $region5
  $region4: #{loopy_layer_forward.6} parent=0 // pred_region
    _
  $region5: #{loopy_layer_forward.6} parent=0 // pred_fallthru
    _
  // Predicated region
  $region6: #{loopy_layer_forward.6} parent=0 // pred_check
    _
  $region7: #{loopy_layer_forward.6} parent=0 // pred_check_branch
    %16 = sbr.rel (0) target = $region9
  $region8: #{loopy_layer_forward.6} parent=0 // pred_region
    _
  $region9: #{loopy_layer_forward.6} parent=0 // pred_fallthru
    _
  // Predicated region
  $region10: #{loopy_layer_forward.6} parent=0 // pred_check
    _
  $region11: #{loopy_layer_forward.6} parent=0 // pred_check_branch
    %18 = sbr.rel (0) target = $region13
  $region12: #{loopy_layer_forward.6} parent=0 // pred_region
    _
  $region13: #{loopy_layer_forward.6} parent=0 // pred_fallthru
    _
  // Predicated region
  $region14: #{loopy_layer_forward.6} parent=0 // pred_check
    _
  $region15: #{loopy_layer_forward.6} parent=0 // pred_check_branch
    %20 = sbr.rel (0) target = $region17
  $region16: #{loopy_layer_forward.6} parent=0 // pred_region
    _
  $region17: #{loopy_layer_forward.6} parent=0 // pred_fallthru
    _
  // Predicated region
  $region18: #{loopy_layer_forward.6} parent=0 // pred_check
    _
  $region19: #{loopy_layer_forward.6} parent=0 // pred_check_branch
    %22 = sbr.rel (0) target = $region21
  $region20: #{loopy_layer_forward.6} parent=0 // pred_region
    _
  $region21: #{loopy_layer_forward.6} parent=0 // pred_fallthru
    _
  // Predicated region
  $region22: #{loopy_layer_forward.6} parent=0 // pred_check
    _
  $region23: #{loopy_layer_forward.6} parent=0 // pred_check_branch
    %24 = sbr.rel (0) target = $region25
  $region24: #{loopy_layer_forward.6} parent=0 // pred_region
    _
  $region25: #{loopy_layer_forward.6} parent=0 // pred_fallthru
    _
  // Predicated region
  $region26: #{loopy_layer_forward.6} parent=0 // pred_check
    _
  $region27: #{loopy_layer_forward.6} parent=0 // pred_check_branch
    %26 = sbr.rel (0) target = $region29
  $region28: #{loopy_layer_forward.6} parent=0 // pred_region
    _
  $region29: #{loopy_layer_forward.6} parent=0 // pred_fallthru
    _
  // Predicated region
  $region30: #{loopy_layer_forward.6} parent=0 // pred_check
    _
  $region31: #{loopy_layer_forward.6} parent=0 // pred_check_branch
    %28 = sbr.rel (0) target = $region33
  $region32: #{loopy_layer_forward.6} parent=0 // pred_region
    _
  $region33: #{loopy_layer_forward.6} parent=0 // pred_fallthru
    _
  %p30 = scmp.eq.s32.totalorder 0, 0
  // Predicated region
  $region34: #{loopy_layer_forward.6} parent=0 // pred_check
    %p31 = pneg %p30
  $region35: #{loopy_layer_forward.6} parent=0 // pred_check_branch
    %33 = sbr.rel (%p31) target = $region37
  $region36: #{loopy_layer_forward.6} parent=0 // pred_region
    %v34 = vld [vmem:[%s3] sm:$0xff]
    %v35 = vld [vmem:[%s3 + $0x8] sm:$0xff]
    %36 = vst [vmem:[%s8] sm:$0xff] %v34
    %37 = vst [vmem:[%s8 + $0x8] sm:$0xff] %v35
  $region37: #{loopy_layer_forward.6} parent=0 // pred_fallthru
    _
  %v38 = vld [vmem:[%s0] sm:$0xf]
  %v39 = vld [vmem:[%s0 + $0x4] sm:$0xf]
  %v40 = vld [vmem:[%s0 + $0x8] sm:$0xf]
  %v41 = vld [vmem:[%s0 + $0xc] sm:$0xf]
  %v42 = vld [vmem:[%s0 + $0x10] sm:$0xf]
  %v43 = vld [vmem:[%s0 + $0x14] sm:$0xf]
  %v44 = vld [vmem:[%s0 + $0x18] sm:$0xf]
  %v45 = vld [vmem:[%s0 + $0x1c] sm:$0xf]
  %v46 = vld [vmem:[%s0 + $0x20] sm:$0xf]
  %v47 = vld [vmem:[%s0 + $0x24] sm:$0xf]
  %v48 = vld [vmem:[%s0 + $0x28] sm:$0xf]
  %v49 = vld [vmem:[%s0 + $0x2c] sm:$0xf]
  %v50 = vld [vmem:[%s0 + $0x30] sm:$0xf]
  %v51 = vld [vmem:[%s0 + $0x34] sm:$0xf]
  %v52 = vld [vmem:[%s0 + $0x38] sm:$0xf]
  %v53 = vld [vmem:[%s0 + $0x3c] sm:$0xf]
  %v54 = vunpack.c.l.bf16 %v38
  %v55 = vunpack.c.l.bf16 %v39
  %v56 = vunpack.c.l.bf16 %v40
  %v57 = vunpack.c.l.bf16 %v41
  %v58 = vunpack.c.l.bf16 %v42
  %v59 = vunpack.c.l.bf16 %v43
  %v60 = vunpack.c.l.bf16 %v44
  %v61 = vunpack.c.l.bf16 %v45
  %v62 = vunpack.c.l.bf16 %v46
  %v63 = vunpack.c.l.bf16 %v47
  %v64 = vunpack.c.l.bf16 %v48
  %v65 = vunpack.c.l.bf16 %v49
  %v66 = vunpack.c.l.bf16 %v50
  %v67 = vunpack.c.l.bf16 %v51
  %v68 = vunpack.c.l.bf16 %v52
  %v69 = vunpack.c.l.bf16 %v53
  %s70 = scalar_lea.vmem %s1, 64
  %v71 = vld [vmem:[%s70] sm:$0xf]
  %v72 = vld [vmem:[%s70 + $0x4] sm:$0xf]
  %v73 = vld [vmem:[%s70 + $0x8] sm:$0xf]
  %v74 = vld [vmem:[%s70 + $0xc] sm:$0xf]
  %v75 = vld [vmem:[%s70 + $0x10] sm:$0xf]
  %v76 = vld [vmem:[%s70 + $0x14] sm:$0xf]
  %v77 = vld [vmem:[%s70 + $0x18] sm:$0xf]
  %v78 = vld [vmem:[%s70 + $0x1c] sm:$0xf]
  %v79 = vld [vmem:[%s70 + $0x20] sm:$0xf]
  %v80 = vld [vmem:[%s70 + $0x24] sm:$0xf]
  %v81 = vld [vmem:[%s70 + $0x28] sm:$0xf]
  %v82 = vld [vmem:[%s70 + $0x2c] sm:$0xf]
  %v83 = vld [vmem:[%s70 + $0x30] sm:$0xf]
  %v84 = vld [vmem:[%s70 + $0x34] sm:$0xf]
  %v85 = vld [vmem:[%s70 + $0x38] sm:$0xf]
  %v86 = vld [vmem:[%s70 + $0x3c] sm:$0xf]
  %v87 = vunpack.c.l.bf16 %v71
  %v88 = vunpack.c.l.bf16 %v72
  %v89 = vunpack.c.l.bf16 %v73
  %v90 = vunpack.c.l.bf16 %v74
  %v91 = vunpack.c.l.bf16 %v75
  %v92 = vunpack.c.l.bf16 %v76
  %v93 = vunpack.c.l.bf16 %v77
  %v94 = vunpack.c.l.bf16 %v78
  %v95 = vunpack.c.l.bf16 %v79
  %v96 = vunpack.c.l.bf16 %v80
  %v97 = vunpack.c.l.bf16 %v81
  %v98 = vunpack.c.l.bf16 %v82
  %v99 = vunpack.c.l.bf16 %v83
  %v100 = vunpack.c.l.bf16 %v84
  %v101 = vunpack.c.l.bf16 %v85
  %v102 = vunpack.c.l.bf16 %v86
  %v103 = vadd.f32 %v54, %v87
  %v104 = vadd.f32 %v55, %v88
  %v105 = vadd.f32 %v56, %v89
  %v106 = vadd.f32 %v57, %v90
  %v107 = vadd.f32 %v58, %v91
  %v108 = vadd.f32 %v59, %v92
  %v109 = vadd.f32 %v60, %v93
  %v110 = vadd.f32 %v61, %v94
  %v111 = vadd.f32 %v62, %v95
  %v112 = vadd.f32 %v63, %v96
  %v113 = vadd.f32 %v64, %v97
  %v114 = vadd.f32 %v65, %v98
  %v115 = vadd.f32 %v66, %v99
  %v116 = vadd.f32 %v67, %v100
  %v117 = vadd.f32 %v68, %v101
  %v118 = vadd.f32 %v69, %v102
  %v119 = vpack.c.bf16 %v104, %v103
  %v120 = vpack.c.bf16 %v106, %v105
  %v121 = vpack.c.bf16 %v108, %v107
  %v122 = vpack.c.bf16 %v110, %v109
  %v123 = vpack.c.bf16 %v112, %v111
  %v124 = vpack.c.bf16 %v114, %v113
  %v125 = vpack.c.bf16 %v116, %v115
  %v126 = vpack.c.bf16 %v118, %v117
  %v127 = vld [vmem:[%s4] sm:$0xf]
  %v128 = vld [vmem:[%s4 + $0x4] sm:$0xf]
  %v129 = vld [vmem:[%s4 + $0x8] sm:$0xf]
  %v130 = vld [vmem:[%s4 + $0xc] sm:$0xf]
  %v131 = vld [vmem:[%s4 + $0x10] sm:$0xf]
  %v132 = vld [vmem:[%s4 + $0x14] sm:$0xf]
  %v133 = vld [vmem:[%s4 + $0x18] sm:$0xf]
  %v134 = vld [vmem:[%s4 + $0x1c] sm:$0xf]
  %v135 = vld [vmem:[%s4 + $0x20] sm:$0xf]
  %v136 = vld [vmem:[%s4 + $0x24] sm:$0xf]
  %v137 = vld [vmem:[%s4 + $0x28] sm:$0xf]
  %v138 = vld [vmem:[%s4 + $0x2c] sm:$0xf]
  %v139 = vld [vmem:[%s4 + $0x30] sm:$0xf]
  %v140 = vld [vmem:[%s4 + $0x34] sm:$0xf]
  %v141 = vld [vmem:[%s4 + $0x38] sm:$0xf]
  %v142 = vld [vmem:[%s4 + $0x3c] sm:$0xf]
  %v143 = vld [vmem:[%s5] sm:$0x1]
  %v145 = vlaneseq
  %v146 = vshrl.u32 %v145, 7
  %v147 = vsub.s32 0, %v146
  %v148 = vrot.slane %v143, %v147
  %v166 = vunpack.c.l.b16 %v127
  %v167 = vunpack.c.l.b16 %v128
  %v168 = vunpack.c.l.b16 %v129
  %v169 = vunpack.c.l.b16 %v130
  %v170 = vunpack.c.l.b16 %v131
  %v171 = vunpack.c.l.b16 %v132
  %v172 = vunpack.c.l.b16 %v133
  %v173 = vunpack.c.l.b16 %v134
  %v174 = vunpack.c.l.b16 %v135
  %v175 = vunpack.c.l.b16 %v136
  %v176 = vunpack.c.l.b16 %v137
  %v177 = vunpack.c.l.b16 %v138
  %v178 = vunpack.c.l.b16 %v139
  %v179 = vunpack.c.l.b16 %v140
  %v180 = vunpack.c.l.b16 %v141
  %v181 = vunpack.c.l.b16 %v142
  %v182 = vpack.c.b16 %v167, %v166
  %v183 = vpack.c.b16 %v169, %v168
  %v184 = vpack.c.b16 %v171, %v170
  %v185 = vpack.c.b16 %v173, %v172
  %v186 = vpack.c.b16 %v175, %v174
  %v187 = vpack.c.b16 %v177, %v176
  %v188 = vpack.c.b16 %v179, %v178
  %v189 = vpack.c.b16 %v181, %v180
  %198 = vmatprep.subr.bf16.mxu0 0
  %199 = vmatpush1.bf16.msra.mxu0 %v189
  %200 = vmatprep.subr.bf16.mxu0 0
  %201 = vmatpush1.bf16.msra.mxu0 %v188
  %202 = vmatprep.subr.bf16.mxu0 0
  %203 = vmatpush1.bf16.msra.mxu0 %v187
  %204 = vmatprep.subr.bf16.mxu0 0
  %205 = vmatpush1.bf16.msra.mxu0 %v186
  %206 = vmatprep.subr.bf16.mxu0 0
  %207 = vmatpush1.bf16.msra.mxu0 %v185
  %208 = vmatprep.subr.bf16.mxu0 0
  %209 = vmatpush1.bf16.msra.mxu0 %v184
  %210 = vmatprep.subr.bf16.mxu0 0
  %211 = vmatpush1.bf16.msra.mxu0 %v183
  %212 = vmatprep.subr.bf16.mxu0 0
  %213 = vmatpush1.bf16.msra.mxu0 %v182
  %214 = vmatprep.subr.bf16.mxu0 0
  %215 = vmatpush2.bf16.msra.mxu0 0
  %216 = vmatprep.subr.bf16.mxu0 0
  %217 = vmatpush2.bf16.msra.mxu0 0
  %218 = vmatprep.subr.bf16.mxu0 0
  %219 = vmatpush2.bf16.msra.mxu0 0
  %220 = vmatprep.subr.bf16.mxu0 0
  %221 = vmatpush2.bf16.msra.mxu0 0
  %222 = vmatprep.subr.bf16.mxu0 0
  %223 = vmatpush2.bf16.msra.mxu0 0
  %224 = vmatprep.subr.bf16.mxu0 0
  %225 = vmatpush2.bf16.msra.mxu0 0
  %226 = vmatprep.subr.bf16.mxu0 0
  %227 = vmatpush2.bf16.msra.mxu0 0
  %228 = vmatprep.subr.bf16.mxu0 0
  %229 = vmatpush2.bf16.msra.mxu0 0
  %230 = vmatprep.mubr.bf16.mxu0 0
  %231 = vmatmul.mubr.bf16.gmra.mxu0 %v119
  %v232 = vpop.f32.mrf.mxu0
  %v233 = vadd.f32 %v148, %v232
  %v234 = vpop.f32.mrf.mxu0
  %v235 = vpop.f32.mrf.mxu0
  %v236 = vadd.f32 %v148, %v235
  %v237 = vpop.f32.mrf.mxu0
  %238 = vmatprep.mubr.bf16.mxu0 0
  %239 = vmatmul.mubr.bf16.gmra.mxu0 %v120
  %v240 = vpop.f32.mrf.mxu0
  %v241 = vadd.f32 %v148, %v240
  %v242 = vpop.f32.mrf.mxu0
  %v243 = vpop.f32.mrf.mxu0
  %v244 = vadd.f32 %v148, %v243
  %v245 = vpop.f32.mrf.mxu0
  %246 = vmatprep.mubr.bf16.mxu0 0
  %247 = vmatmul.mubr.bf16.gmra.mxu0 %v121
  %v248 = vpop.f32.mrf.mxu0
  %v249 = vadd.f32 %v148, %v248
  %v250 = vpop.f32.mrf.mxu0
  %v251 = vpop.f32.mrf.mxu0
  %v252 = vadd.f32 %v148, %v251
  %v253 = vpop.f32.mrf.mxu0
  %254 = vmatprep.mubr.bf16.mxu0 0
  %255 = vmatmul.mubr.bf16.gmra.mxu0 %v122
  %v256 = vpop.f32.mrf.mxu0
  %v257 = vadd.f32 %v148, %v256
  %v258 = vpop.f32.mrf.mxu0
  %v259 = vpop.f32.mrf.mxu0
  %v260 = vadd.f32 %v148, %v259
  %v261 = vpop.f32.mrf.mxu0
  %262 = vmatprep.mubr.bf16.mxu0 0
  %263 = vmatmul.mubr.bf16.gmra.mxu0 %v123
  %v264 = vpop.f32.mrf.mxu0
  %v265 = vadd.f32 %v148, %v264
  %v266 = vpop.f32.mrf.mxu0
  %v267 = vpop.f32.mrf.mxu0
  %v268 = vadd.f32 %v148, %v267
  %v269 = vpop.f32.mrf.mxu0
  %270 = vmatprep.mubr.bf16.mxu0 0
  %271 = vmatmul.mubr.bf16.gmra.mxu0 %v124
  %v272 = vpop.f32.mrf.mxu0
  %v273 = vadd.f32 %v148, %v272
  %v274 = vpop.f32.mrf.mxu0
  %v275 = vpop.f32.mrf.mxu0
  %v276 = vadd.f32 %v148, %v275
  %v277 = vpop.f32.mrf.mxu0
  %278 = vmatprep.mubr.bf16.mxu0 0
  %279 = vmatmul.mubr.bf16.gmra.mxu0 %v125
  %v280 = vpop.f32.mrf.mxu0
  %v281 = vadd.f32 %v148, %v280
  %v282 = vpop.f32.mrf.mxu0
  %v283 = vpop.f32.mrf.mxu0
  %v284 = vadd.f32 %v148, %v283
  %v285 = vpop.f32.mrf.mxu0
  %286 = vmatprep.mubr.bf16.mxu0 0
  %287 = vmatmul.mubr.bf16.gmra.mxu0 %v126
  %v288 = vpop.f32.mrf.mxu0
  %v289 = vadd.f32 %v148, %v288
  %v290 = vpop.f32.mrf.mxu0
  %v291 = vpop.f32.mrf.mxu0
  %v292 = vadd.f32 %v148, %v291
  %v293 = vpop.f32.mrf.mxu0
  %294 = vdwg.mxu0
  %v295 = vmax.f32 %v233, 0.0
  %v296 = vmax.f32 %v236, 0.0
  %v297 = vmax.f32 %v241, 0.0
  %v298 = vmax.f32 %v244, 0.0
  %v299 = vmax.f32 %v249, 0.0
  %v300 = vmax.f32 %v252, 0.0
  %v301 = vmax.f32 %v257, 0.0
  %v302 = vmax.f32 %v260, 0.0
  %v303 = vmax.f32 %v265, 0.0
  %v304 = vmax.f32 %v268, 0.0
  %v305 = vmax.f32 %v273, 0.0
  %v306 = vmax.f32 %v276, 0.0
  %v307 = vmax.f32 %v281, 0.0
  %v308 = vmax.f32 %v284, 0.0
  %v309 = vmax.f32 %v289, 0.0
  %v310 = vmax.f32 %v292, 0.0
  %s311 = scalar_lea.vmem %s0, 64
  %v312 = vld [vmem:[%s311] sm:$0xf]
  %v313 = vld [vmem:[%s311 + $0x4] sm:$0xf]
  %v314 = vld [vmem:[%s311 + $0x8] sm:$0xf]
  %v315 = vld [vmem:[%s311 + $0xc] sm:$0xf]
  %v316 = vld [vmem:[%s311 + $0x10] sm:$0xf]
  %v317 = vld [vmem:[%s311 + $0x14] sm:$0xf]
  %v318 = vld [vmem:[%s311 + $0x18] sm:$0xf]
  %v319 = vld [vmem:[%s311 + $0x1c] sm:$0xf]
  %v320 = vld [vmem:[%s311 + $0x20] sm:$0xf]
  %v321 = vld [vmem:[%s311 + $0x24] sm:$0xf]
  %v322 = vld [vmem:[%s311 + $0x28] sm:$0xf]
  %v323 = vld [vmem:[%s311 + $0x2c] sm:$0xf]
  %v324 = vld [vmem:[%s311 + $0x30] sm:$0xf]
  %v325 = vld [vmem:[%s311 + $0x34] sm:$0xf]
  %v326 = vld [vmem:[%s311 + $0x38] sm:$0xf]
  %v327 = vld [vmem:[%s311 + $0x3c] sm:$0xf]
  %v328 = vunpack.c.l.bf16 %v312
  %v329 = vunpack.c.l.bf16 %v313
  %v330 = vunpack.c.l.bf16 %v314
  %v331 = vunpack.c.l.bf16 %v315
  %v332 = vunpack.c.l.bf16 %v316
  %v333 = vunpack.c.l.bf16 %v317
  %v334 = vunpack.c.l.bf16 %v318
  %v335 = vunpack.c.l.bf16 %v319
  %v336 = vunpack.c.l.bf16 %v320
  %v337 = vunpack.c.l.bf16 %v321
  %v338 = vunpack.c.l.bf16 %v322
  %v339 = vunpack.c.l.bf16 %v323
  %v340 = vunpack.c.l.bf16 %v324
  %v341 = vunpack.c.l.bf16 %v325
  %v342 = vunpack.c.l.bf16 %v326
  %v343 = vunpack.c.l.bf16 %v327
  %v344 = vld [vmem:[%s1] sm:$0xf]
  %v345 = vld [vmem:[%s1 + $0x4] sm:$0xf]
  %v346 = vld [vmem:[%s1 + $0x8] sm:$0xf]
  %v347 = vld [vmem:[%s1 + $0xc] sm:$0xf]
  %v348 = vld [vmem:[%s1 + $0x10] sm:$0xf]
  %v349 = vld [vmem:[%s1 + $0x14] sm:$0xf]
  %v350 = vld [vmem:[%s1 + $0x18] sm:$0xf]
  %v351 = vld [vmem:[%s1 + $0x1c] sm:$0xf]
  %v352 = vld [vmem:[%s1 + $0x20] sm:$0xf]
  %v353 = vld [vmem:[%s1 + $0x24] sm:$0xf]
  %v354 = vld [vmem:[%s1 + $0x28] sm:$0xf]
  %v355 = vld [vmem:[%s1 + $0x2c] sm:$0xf]
  %v356 = vld [vmem:[%s1 + $0x30] sm:$0xf]
  %v357 = vld [vmem:[%s1 + $0x34] sm:$0xf]
  %v358 = vld [vmem:[%s1 + $0x38] sm:$0xf]
  %v359 = vld [vmem:[%s1 + $0x3c] sm:$0xf]
  %v360 = vunpack.c.l.bf16 %v344
  %v361 = vunpack.c.l.bf16 %v345
  %v362 = vunpack.c.l.bf16 %v346
  %v363 = vunpack.c.l.bf16 %v347
  %v364 = vunpack.c.l.bf16 %v348
  %v365 = vunpack.c.l.bf16 %v349
  %v366 = vunpack.c.l.bf16 %v350
  %v367 = vunpack.c.l.bf16 %v351
  %v368 = vunpack.c.l.bf16 %v352
  %v369 = vunpack.c.l.bf16 %v353
  %v370 = vunpack.c.l.bf16 %v354
  %v371 = vunpack.c.l.bf16 %v355
  %v372 = vunpack.c.l.bf16 %v356
  %v373 = vunpack.c.l.bf16 %v357
  %v374 = vunpack.c.l.bf16 %v358
  %v375 = vunpack.c.l.bf16 %v359
  %v376 = vadd.f32 %v328, %v360
  %v377 = vadd.f32 %v329, %v361
  %v378 = vadd.f32 %v330, %v362
  %v379 = vadd.f32 %v331, %v363
  %v380 = vadd.f32 %v332, %v364
  %v381 = vadd.f32 %v333, %v365
  %v382 = vadd.f32 %v334, %v366
  %v383 = vadd.f32 %v335, %v367
  %v384 = vadd.f32 %v336, %v368
  %v385 = vadd.f32 %v337, %v369
  %v386 = vadd.f32 %v338, %v370
  %v387 = vadd.f32 %v339, %v371
  %v388 = vadd.f32 %v340, %v372
  %v389 = vadd.f32 %v341, %v373
  %v390 = vadd.f32 %v342, %v374
  %v391 = vadd.f32 %v343, %v375
  %s392 = scalar_lea.vmem %s1, 128
  %v393 = vld [vmem:[%s392] sm:$0xf]
  %v394 = vld [vmem:[%s392 + $0x4] sm:$0xf]
  %v395 = vld [vmem:[%s392 + $0x8] sm:$0xf]
  %v396 = vld [vmem:[%s392 + $0xc] sm:$0xf]
  %v397 = vld [vmem:[%s392 + $0x10] sm:$0xf]
  %v398 = vld [vmem:[%s392 + $0x14] sm:$0xf]
  %v399 = vld [vmem:[%s392 + $0x18] sm:$0xf]
  %v400 = vld [vmem:[%s392 + $0x1c] sm:$0xf]
  %v401 = vld [vmem:[%s392 + $0x20] sm:$0xf]
  %v402 = vld [vmem:[%s392 + $0x24] sm:$0xf]
  %v403 = vld [vmem:[%s392 + $0x28] sm:$0xf]
  %v404 = vld [vmem:[%s392 + $0x2c] sm:$0xf]
  %v405 = vld [vmem:[%s392 + $0x30] sm:$0xf]
  %v406 = vld [vmem:[%s392 + $0x34] sm:$0xf]
  %v407 = vld [vmem:[%s392 + $0x38] sm:$0xf]
  %v408 = vld [vmem:[%s392 + $0x3c] sm:$0xf]
  %v409 = vunpack.c.l.bf16 %v393
  %v410 = vunpack.c.l.bf16 %v394
  %v411 = vunpack.c.l.bf16 %v395
  %v412 = vunpack.c.l.bf16 %v396
  %v413 = vunpack.c.l.bf16 %v397
  %v414 = vunpack.c.l.bf16 %v398
  %v415 = vunpack.c.l.bf16 %v399
  %v416 = vunpack.c.l.bf16 %v400
  %v417 = vunpack.c.l.bf16 %v401
  %v418 = vunpack.c.l.bf16 %v402
  %v419 = vunpack.c.l.bf16 %v403
  %v420 = vunpack.c.l.bf16 %v404
  %v421 = vunpack.c.l.bf16 %v405
  %v422 = vunpack.c.l.bf16 %v406
  %v423 = vunpack.c.l.bf16 %v407
  %v424 = vunpack.c.l.bf16 %v408
  %v425 = vadd.f32 %v376, %v409
  %v426 = vadd.f32 %v377, %v410
  %v427 = vadd.f32 %v378, %v411
  %v428 = vadd.f32 %v379, %v412
  %v429 = vadd.f32 %v380, %v413
  %v430 = vadd.f32 %v381, %v414
  %v431 = vadd.f32 %v382, %v415
  %v432 = vadd.f32 %v383, %v416
  %v433 = vadd.f32 %v384, %v417
  %v434 = vadd.f32 %v385, %v418
  %v435 = vadd.f32 %v386, %v419
  %v436 = vadd.f32 %v387, %v420
  %v437 = vadd.f32 %v388, %v421
  %v438 = vadd.f32 %v389, %v422
  %v439 = vadd.f32 %v390, %v423
  %v440 = vadd.f32 %v391, %v424
  %v441 = vpack.c.bf16 %v426, %v425
  %v442 = vpack.c.bf16 %v428, %v427
  %v443 = vpack.c.bf16 %v430, %v429
  %v444 = vpack.c.bf16 %v432, %v431
  %v445 = vpack.c.bf16 %v434, %v433
  %v446 = vpack.c.bf16 %v436, %v435
  %v447 = vpack.c.bf16 %v438, %v437
  %v448 = vpack.c.bf16 %v440, %v439
  %449 = vmatprep.subr.bf16.mxu0 0
  %450 = vmatpush1.bf16.msra.mxu0 %v189
  %451 = vmatprep.subr.bf16.mxu0 0
  %452 = vmatpush1.bf16.msra.mxu0 %v188
  %453 = vmatprep.subr.bf16.mxu0 0
  %454 = vmatpush1.bf16.msra.mxu0 %v187
  %455 = vmatprep.subr.bf16.mxu0 0
  %456 = vmatpush1.bf16.msra.mxu0 %v186
  %457 = vmatprep.subr.bf16.mxu0 0
  %458 = vmatpush1.bf16.msra.mxu0 %v185
  %459 = vmatprep.subr.bf16.mxu0 0
  %460 = vmatpush1.bf16.msra.mxu0 %v184
  %461 = vmatprep.subr.bf16.mxu0 0
  %462 = vmatpush1.bf16.msra.mxu0 %v183
  %463 = vmatprep.subr.bf16.mxu0 0
  %464 = vmatpush1.bf16.msra.mxu0 %v182
  %465 = vmatprep.subr.bf16.mxu0 0
  %466 = vmatpush2.bf16.msra.mxu0 0
  %467 = vmatprep.subr.bf16.mxu0 0
  %468 = vmatpush2.bf16.msra.mxu0 0
  %469 = vmatprep.subr.bf16.mxu0 0
  %470 = vmatpush2.bf16.msra.mxu0 0
  %471 = vmatprep.subr.bf16.mxu0 0
  %472 = vmatpush2.bf16.msra.mxu0 0
  %473 = vmatprep.subr.bf16.mxu0 0
  %474 = vmatpush2.bf16.msra.mxu0 0
  %475 = vmatprep.subr.bf16.mxu0 0
  %476 = vmatpush2.bf16.msra.mxu0 0
  %477 = vmatprep.subr.bf16.mxu0 0
  %478 = vmatpush2.bf16.msra.mxu0 0
  %479 = vmatprep.subr.bf16.mxu0 0
  %480 = vmatpush2.bf16.msra.mxu0 0
  %481 = vmatprep.mubr.bf16.mxu0 0
  %482 = vmatmul.mubr.bf16.gmra.mxu0 %v441
  %v483 = vpop.f32.mrf.mxu0
  %v484 = vadd.f32 %v148, %v483
  %v485 = vpop.f32.mrf.mxu0
  %v486 = vpop.f32.mrf.mxu0
  %v487 = vadd.f32 %v148, %v486
  %v488 = vpop.f32.mrf.mxu0
  %489 = vmatprep.mubr.bf16.mxu0 0
  %490 = vmatmul.mubr.bf16.gmra.mxu0 %v442
  %v491 = vpop.f32.mrf.mxu0
  %v492 = vadd.f32 %v148, %v491
  %v493 = vpop.f32.mrf.mxu0
  %v494 = vpop.f32.mrf.mxu0
  %v495 = vadd.f32 %v148, %v494
  %v496 = vpop.f32.mrf.mxu0
  %497 = vmatprep.mubr.bf16.mxu0 0
  %498 = vmatmul.mubr.bf16.gmra.mxu0 %v443
  %v499 = vpop.f32.mrf.mxu0
  %v500 = vadd.f32 %v148, %v499
  %v501 = vpop.f32.mrf.mxu0
  %v502 = vpop.f32.mrf.mxu0
  %v503 = vadd.f32 %v148, %v502
  %v504 = vpop.f32.mrf.mxu0
  %505 = vmatprep.mubr.bf16.mxu0 0
  %506 = vmatmul.mubr.bf16.gmra.mxu0 %v444
  %v507 = vpop.f32.mrf.mxu0
  %v508 = vadd.f32 %v148, %v507
  %v509 = vpop.f32.mrf.mxu0
  %v510 = vpop.f32.mrf.mxu0
  %v511 = vadd.f32 %v148, %v510
  %v512 = vpop.f32.mrf.mxu0
  %513 = vmatprep.mubr.bf16.mxu0 0
  %514 = vmatmul.mubr.bf16.gmra.mxu0 %v445
  %v515 = vpop.f32.mrf.mxu0
  %v516 = vadd.f32 %v148, %v515
  %v517 = vpop.f32.mrf.mxu0
  %v518 = vpop.f32.mrf.mxu0
  %v519 = vadd.f32 %v148, %v518
  %v520 = vpop.f32.mrf.mxu0
  %521 = vmatprep.mubr.bf16.mxu0 0
  %522 = vmatmul.mubr.bf16.gmra.mxu0 %v446
  %v523 = vpop.f32.mrf.mxu0
  %v524 = vadd.f32 %v148, %v523
  %v525 = vpop.f32.mrf.mxu0
  %v526 = vpop.f32.mrf.mxu0
  %v527 = vadd.f32 %v148, %v526
  %v528 = vpop.f32.mrf.mxu0
  %529 = vmatprep.mubr.bf16.mxu0 0
  %530 = vmatmul.mubr.bf16.gmra.mxu0 %v447
  %v531 = vpop.f32.mrf.mxu0
  %v532 = vadd.f32 %v148, %v531
  %v533 = vpop.f32.mrf.mxu0
  %v534 = vpop.f32.mrf.mxu0
  %v535 = vadd.f32 %v148, %v534
  %v536 = vpop.f32.mrf.mxu0
  %537 = vmatprep.mubr.bf16.mxu0 0
  %538 = vmatmul.mubr.bf16.gmra.mxu0 %v448
  %v539 = vpop.f32.mrf.mxu0
  %v540 = vadd.f32 %v148, %v539
  %v541 = vpop.f32.mrf.mxu0
  %v542 = vpop.f32.mrf.mxu0
  %v543 = vadd.f32 %v148, %v542
  %v544 = vpop.f32.mrf.mxu0
  %545 = vdwg.mxu0
  %v546 = vmax.f32 %v484, 0.0
  %v547 = vmax.f32 %v487, 0.0
  %v548 = vmax.f32 %v492, 0.0
  %v549 = vmax.f32 %v495, 0.0
  %v550 = vmax.f32 %v500, 0.0
  %v551 = vmax.f32 %v503, 0.0
  %v552 = vmax.f32 %v508, 0.0
  %v553 = vmax.f32 %v511, 0.0
  %v554 = vmax.f32 %v516, 0.0
  %v555 = vmax.f32 %v519, 0.0
  %v556 = vmax.f32 %v524, 0.0
  %v557 = vmax.f32 %v527, 0.0
  %v558 = vmax.f32 %v532, 0.0
  %v559 = vmax.f32 %v535, 0.0
  %v560 = vmax.f32 %v540, 0.0
  %v561 = vmax.f32 %v543, 0.0
  %v562 = vadd.f32 %v295, %v546
  %v563 = vadd.f32 %v296, %v547
  %v564 = vadd.f32 %v297, %v548
  %v565 = vadd.f32 %v298, %v549
  %v566 = vadd.f32 %v299, %v550
  %v567 = vadd.f32 %v300, %v551
  %v568 = vadd.f32 %v301, %v552
  %v569 = vadd.f32 %v302, %v553
  %v570 = vadd.f32 %v303, %v554
  %v571 = vadd.f32 %v304, %v555
  %v572 = vadd.f32 %v305, %v556
  %v573 = vadd.f32 %v306, %v557
  %v574 = vadd.f32 %v307, %v558
  %v575 = vadd.f32 %v308, %v559
  %v576 = vadd.f32 %v309, %v560
  %v577 = vadd.f32 %v310, %v561
  %s578 = scalar_lea.vmem %s0, 128
  %v579 = vld [vmem:[%s578] sm:$0xf]
  %v580 = vld [vmem:[%s578 + $0x4] sm:$0xf]
  %v581 = vld [vmem:[%s578 + $0x8] sm:$0xf]
  %v582 = vld [vmem:[%s578 + $0xc] sm:$0xf]
  %v583 = vld [vmem:[%s578 + $0x10] sm:$0xf]
  %v584 = vld [vmem:[%s578 + $0x14] sm:$0xf]
  %v585 = vld [vmem:[%s578 + $0x18] sm:$0xf]
  %v586 = vld [vmem:[%s578 + $0x1c] sm:$0xf]
  %v587 = vld [vmem:[%s578 + $0x20] sm:$0xf]
  %v588 = vld [vmem:[%s578 + $0x24] sm:$0xf]
  %v589 = vld [vmem:[%s578 + $0x28] sm:$0xf]
  %v590 = vld [vmem:[%s578 + $0x2c] sm:$0xf]
  %v591 = vld [vmem:[%s578 + $0x30] sm:$0xf]
  %v592 = vld [vmem:[%s578 + $0x34] sm:$0xf]
  %v593 = vld [vmem:[%s578 + $0x38] sm:$0xf]
  %v594 = vld [vmem:[%s578 + $0x3c] sm:$0xf]
  %v595 = vunpack.c.l.bf16 %v579
  %v596 = vunpack.c.l.bf16 %v580
  %v597 = vunpack.c.l.bf16 %v581
  %v598 = vunpack.c.l.bf16 %v582
  %v599 = vunpack.c.l.bf16 %v583
  %v600 = vunpack.c.l.bf16 %v584
  %v601 = vunpack.c.l.bf16 %v585
  %v602 = vunpack.c.l.bf16 %v586
  %v603 = vunpack.c.l.bf16 %v587
  %v604 = vunpack.c.l.bf16 %v588
  %v605 = vunpack.c.l.bf16 %v589
  %v606 = vunpack.c.l.bf16 %v590
  %v607 = vunpack.c.l.bf16 %v591
  %v608 = vunpack.c.l.bf16 %v592
  %v609 = vunpack.c.l.bf16 %v593
  %v610 = vunpack.c.l.bf16 %v594
  %v611 = vadd.f32 %v595, %v87
  %v612 = vadd.f32 %v596, %v88
  %v613 = vadd.f32 %v597, %v89
  %v614 = vadd.f32 %v598, %v90
  %v615 = vadd.f32 %v599, %v91
  %v616 = vadd.f32 %v600, %v92
  %v617 = vadd.f32 %v601, %v93
  %v618 = vadd.f32 %v602, %v94
  %v619 = vadd.f32 %v603, %v95
  %v620 = vadd.f32 %v604, %v96
  %v621 = vadd.f32 %v605, %v97
  %v622 = vadd.f32 %v606, %v98
  %v623 = vadd.f32 %v607, %v99
  %v624 = vadd.f32 %v608, %v100
  %v625 = vadd.f32 %v609, %v101
  %v626 = vadd.f32 %v610, %v102
  %v627 = vpack.c.bf16 %v612, %v611
  %v628 = vpack.c.bf16 %v614, %v613
  %v629 = vpack.c.bf16 %v616, %v615
  %v630 = vpack.c.bf16 %v618, %v617
  %v631 = vpack.c.bf16 %v620, %v619
  %v632 = vpack.c.bf16 %v622, %v621
  %v633 = vpack.c.bf16 %v624, %v623
  %v634 = vpack.c.bf16 %v626, %v625
  %635 = vmatprep.subr.bf16.mxu0 0
  %636 = vmatpush1.bf16.msra.mxu0 %v189
  %637 = vmatprep.subr.bf16.mxu0 0
  %638 = vmatpush1.bf16.msra.mxu0 %v188
  %639 = vmatprep.subr.bf16.mxu0 0
  %640 = vmatpush1.bf16.msra.mxu0 %v187
  %641 = vmatprep.subr.bf16.mxu0 0
  %642 = vmatpush1.bf16.msra.mxu0 %v186
  %643 = vmatprep.subr.bf16.mxu0 0
  %644 = vmatpush1.bf16.msra.mxu0 %v185
  %645 = vmatprep.subr.bf16.mxu0 0
  %646 = vmatpush1.bf16.msra.mxu0 %v184
  %647 = vmatprep.subr.bf16.mxu0 0
  %648 = vmatpush1.bf16.msra.mxu0 %v183
  %649 = vmatprep.subr.bf16.mxu0 0
  %650 = vmatpush1.bf16.msra.mxu0 %v182
  %651 = vmatprep.subr.bf16.mxu0 0
  %652 = vmatpush2.bf16.msra.mxu0 0
  %653 = vmatprep.subr.bf16.mxu0 0
  %654 = vmatpush2.bf16.msra.mxu0 0
  %655 = vmatprep.subr.bf16.mxu0 0
  %656 = vmatpush2.bf16.msra.mxu0 0
  %657 = vmatprep.subr.bf16.mxu0 0
  %658 = vmatpush2.bf16.msra.mxu0 0
  %659 = vmatprep.subr.bf16.mxu0 0
  %660 = vmatpush2.bf16.msra.mxu0 0
  %661 = vmatprep.subr.bf16.mxu0 0
  %662 = vmatpush2.bf16.msra.mxu0 0
  %663 = vmatprep.subr.bf16.mxu0 0
  %664 = vmatpush2.bf16.msra.mxu0 0
  %665 = vmatprep.subr.bf16.mxu0 0
  %666 = vmatpush2.bf16.msra.mxu0 0
  %667 = vmatprep.mubr.bf16.mxu0 0
  %668 = vmatmul.mubr.bf16.gmra.mxu0 %v627
  %v669 = vpop.f32.mrf.mxu0
  %v670 = vadd.f32 %v148, %v669
  %v671 = vpop.f32.mrf.mxu0
  %v672 = vpop.f32.mrf.mxu0
  %v673 = vadd.f32 %v148, %v672
  %v674 = vpop.f32.mrf.mxu0
  %675 = vmatprep.mubr.bf16.mxu0 0
  %676 = vmatmul.mubr.bf16.gmra.mxu0 %v628
  %v677 = vpop.f32.mrf.mxu0
  %v678 = vadd.f32 %v148, %v677
  %v679 = vpop.f32.mrf.mxu0
  %v680 = vpop.f32.mrf.mxu0
  %v681 = vadd.f32 %v148, %v680
  %v682 = vpop.f32.mrf.mxu0
  %683 = vmatprep.mubr.bf16.mxu0 0
  %684 = vmatmul.mubr.bf16.gmra.mxu0 %v629
  %v685 = vpop.f32.mrf.mxu0
  %v686 = vadd.f32 %v148, %v685
  %v687 = vpop.f32.mrf.mxu0
  %v688 = vpop.f32.mrf.mxu0
  %v689 = vadd.f32 %v148, %v688
  %v690 = vpop.f32.mrf.mxu0
  %691 = vmatprep.mubr.bf16.mxu0 0
  %692 = vmatmul.mubr.bf16.gmra.mxu0 %v630
  %v693 = vpop.f32.mrf.mxu0
  %v694 = vadd.f32 %v148, %v693
  %v695 = vpop.f32.mrf.mxu0
  %v696 = vpop.f32.mrf.mxu0
  %v697 = vadd.f32 %v148, %v696
  %v698 = vpop.f32.mrf.mxu0
  %699 = vmatprep.mubr.bf16.mxu0 0
  %700 = vmatmul.mubr.bf16.gmra.mxu0 %v631
  %v701 = vpop.f32.mrf.mxu0
  %v702 = vadd.f32 %v148, %v701
  %v703 = vpop.f32.mrf.mxu0
  %v704 = vpop.f32.mrf.mxu0
  %v705 = vadd.f32 %v148, %v704
  %v706 = vpop.f32.mrf.mxu0
  %707 = vmatprep.mubr.bf16.mxu0 0
  %708 = vmatmul.mubr.bf16.gmra.mxu0 %v632
  %v709 = vpop.f32.mrf.mxu0
  %v710 = vadd.f32 %v148, %v709
  %v711 = vpop.f32.mrf.mxu0
  %v712 = vpop.f32.mrf.mxu0
  %v713 = vadd.f32 %v148, %v712
  %v714 = vpop.f32.mrf.mxu0
  %715 = vmatprep.mubr.bf16.mxu0 0
  %716 = vmatmul.mubr.bf16.gmra.mxu0 %v633
  %v717 = vpop.f32.mrf.mxu0
  %v718 = vadd.f32 %v148, %v717
  %v719 = vpop.f32.mrf.mxu0
  %v720 = vpop.f32.mrf.mxu0
  %v721 = vadd.f32 %v148, %v720
  %v722 = vpop.f32.mrf.mxu0
  %723 = vmatprep.mubr.bf16.mxu0 0
  %724 = vmatmul.mubr.bf16.gmra.mxu0 %v634
  %v725 = vpop.f32.mrf.mxu0
  %v726 = vadd.f32 %v148, %v725
  %v727 = vpop.f32.mrf.mxu0
  %v728 = vpop.f32.mrf.mxu0
  %v729 = vadd.f32 %v148, %v728
  %v730 = vpop.f32.mrf.mxu0
  %731 = vdwg.mxu0
  %v732 = vmax.f32 %v670, 0.0
  %v733 = vmax.f32 %v673, 0.0
  %v734 = vmax.f32 %v678, 0.0
  %v735 = vmax.f32 %v681, 0.0
  %v736 = vmax.f32 %v686, 0.0
  %v737 = vmax.f32 %v689, 0.0
  %v738 = vmax.f32 %v694, 0.0
  %v739 = vmax.f32 %v697, 0.0
  %v740 = vmax.f32 %v702, 0.0
  %v741 = vmax.f32 %v705, 0.0
  %v742 = vmax.f32 %v710, 0.0
  %v743 = vmax.f32 %v713, 0.0
  %v744 = vmax.f32 %v718, 0.0
  %v745 = vmax.f32 %v721, 0.0
  %v746 = vmax.f32 %v726, 0.0
  %v747 = vmax.f32 %v729, 0.0
  %v748 = vadd.f32 %v562, %v732
  %v749 = vadd.f32 %v563, %v733
  %v750 = vadd.f32 %v564, %v734
  %v751 = vadd.f32 %v565, %v735
  %v752 = vadd.f32 %v566, %v736
  %v753 = vadd.f32 %v567, %v737
  %v754 = vadd.f32 %v568, %v738
  %v755 = vadd.f32 %v569, %v739
  %v756 = vadd.f32 %v570, %v740
  %v757 = vadd.f32 %v571, %v741
  %v758 = vadd.f32 %v572, %v742
  %v759 = vadd.f32 %v573, %v743
  %v760 = vadd.f32 %v574, %v744
  %v761 = vadd.f32 %v575, %v745
  %v762 = vadd.f32 %v576, %v746
  %v763 = vadd.f32 %v577, %v747
  %v764 = vpack.c.bf16 %v749, %v748
  %v765 = vpack.c.bf16 %v751, %v750
  %v766 = vpack.c.bf16 %v753, %v752
  %v767 = vpack.c.bf16 %v755, %v754
  %v768 = vpack.c.bf16 %v757, %v756
  %v769 = vpack.c.bf16 %v759, %v758
  %v770 = vpack.c.bf16 %v761, %v760
  %v771 = vpack.c.bf16 %v763, %v762
  %v772 = vld [vmem:[%s6] sm:$0xf]
  %v773 = vld [vmem:[%s6 + $0x4] sm:$0xf]
  %v774 = vld [vmem:[%s6 + $0x8] sm:$0xf]
  %v775 = vld [vmem:[%s6 + $0xc] sm:$0xf]
  %v776 = vld [vmem:[%s6 + $0x10] sm:$0xf]
  %v777 = vld [vmem:[%s6 + $0x14] sm:$0xf]
  %v778 = vld [vmem:[%s6 + $0x18] sm:$0xf]
  %v779 = vld [vmem:[%s6 + $0x1c] sm:$0xf]
  %v780 = vld [vmem:[%s6 + $0x20] sm:$0xf]
  %v781 = vld [vmem:[%s6 + $0x24] sm:$0xf]
  %v782 = vld [vmem:[%s6 + $0x28] sm:$0xf]
  %v783 = vld [vmem:[%s6 + $0x2c] sm:$0xf]
  %v784 = vld [vmem:[%s6 + $0x30] sm:$0xf]
  %v785 = vld [vmem:[%s6 + $0x34] sm:$0xf]
  %v786 = vld [vmem:[%s6 + $0x38] sm:$0xf]
  %v787 = vld [vmem:[%s6 + $0x3c] sm:$0xf]
  %v788 = vld [vmem:[%s7] sm:$0x1]
  %v789 = vmul.f32 %v788, 3.0
  %v791 = vlaneseq
  %v792 = vshrl.u32 %v791, 7
  %v793 = vsub.s32 0, %v792
  %v794 = vrot.slane %v789, %v793
  %v812 = vunpack.c.l.b16 %v772
  %v813 = vunpack.c.l.b16 %v773
  %v814 = vunpack.c.l.b16 %v774
  %v815 = vunpack.c.l.b16 %v775
  %v816 = vunpack.c.l.b16 %v776
  %v817 = vunpack.c.l.b16 %v777
  %v818 = vunpack.c.l.b16 %v778
  %v819 = vunpack.c.l.b16 %v779
  %v820 = vunpack.c.l.b16 %v780
  %v821 = vunpack.c.l.b16 %v781
  %v822 = vunpack.c.l.b16 %v782
  %v823 = vunpack.c.l.b16 %v783
  %v824 = vunpack.c.l.b16 %v784
  %v825 = vunpack.c.l.b16 %v785
  %v826 = vunpack.c.l.b16 %v786
  %v827 = vunpack.c.l.b16 %v787
  %v828 = vpack.c.b16 %v813, %v812
  %v829 = vpack.c.b16 %v815, %v814
  %v830 = vpack.c.b16 %v817, %v816
  %v831 = vpack.c.b16 %v819, %v818
  %v832 = vpack.c.b16 %v821, %v820
  %v833 = vpack.c.b16 %v823, %v822
  %v834 = vpack.c.b16 %v825, %v824
  %v835 = vpack.c.b16 %v827, %v826
  %844 = vmatprep.subr.bf16.mxu0 0
  %845 = vmatpush1.bf16.msra.mxu0 %v835
  %846 = vmatprep.subr.bf16.mxu0 0
  %847 = vmatpush1.bf16.msra.mxu0 %v834
  %848 = vmatprep.subr.bf16.mxu0 0
  %849 = vmatpush1.bf16.msra.mxu0 %v833
  %850 = vmatprep.subr.bf16.mxu0 0
  %851 = vmatpush1.bf16.msra.mxu0 %v832
  %852 = vmatprep.subr.bf16.mxu0 0
  %853 = vmatpush1.bf16.msra.mxu0 %v831
  %854 = vmatprep.subr.bf16.mxu0 0
  %855 = vmatpush1.bf16.msra.mxu0 %v830
  %856 = vmatprep.subr.bf16.mxu0 0
  %857 = vmatpush1.bf16.msra.mxu0 %v829
  %858 = vmatprep.subr.bf16.mxu0 0
  %859 = vmatpush1.bf16.msra.mxu0 %v828
  %860 = vmatprep.subr.bf16.mxu0 0
  %861 = vmatpush2.bf16.msra.mxu0 0
  %862 = vmatprep.subr.bf16.mxu0 0
  %863 = vmatpush2.bf16.msra.mxu0 0
  %864 = vmatprep.subr.bf16.mxu0 0
  %865 = vmatpush2.bf16.msra.mxu0 0
  %866 = vmatprep.subr.bf16.mxu0 0
  %867 = vmatpush2.bf16.msra.mxu0 0
  %868 = vmatprep.subr.bf16.mxu0 0
  %869 = vmatpush2.bf16.msra.mxu0 0
  %870 = vmatprep.subr.bf16.mxu0 0
  %871 = vmatpush2.bf16.msra.mxu0 0
  %872 = vmatprep.subr.bf16.mxu0 0
  %873 = vmatpush2.bf16.msra.mxu0 0
  %874 = vmatprep.subr.bf16.mxu0 0
  %875 = vmatpush2.bf16.msra.mxu0 0
  %876 = vmatprep.mubr.bf16.mxu0 0
  %877 = vmatmul.mubr.bf16.gmra.mxu0 %v764
  %v878 = vpop.f32.mrf.mxu0
  %v879 = vadd.f32 %v794, %v878
  %v880 = vpop.f32.mrf.mxu0
  %v881 = vpop.f32.mrf.mxu0
  %v882 = vadd.f32 %v794, %v881
  %v883 = vpop.f32.mrf.mxu0
  %884 = vmatprep.mubr.bf16.mxu0 0
  %885 = vmatmul.mubr.bf16.gmra.mxu0 %v765
  %v886 = vpop.f32.mrf.mxu0
  %v887 = vadd.f32 %v794, %v886
  %v888 = vpop.f32.mrf.mxu0
  %v889 = vpop.f32.mrf.mxu0
  %v890 = vadd.f32 %v794, %v889
  %v891 = vpop.f32.mrf.mxu0
  %892 = vmatprep.mubr.bf16.mxu0 0
  %893 = vmatmul.mubr.bf16.gmra.mxu0 %v766
  %v894 = vpop.f32.mrf.mxu0
  %v895 = vadd.f32 %v794, %v894
  %v896 = vpop.f32.mrf.mxu0
  %v897 = vpop.f32.mrf.mxu0
  %v898 = vadd.f32 %v794, %v897
  %v899 = vpop.f32.mrf.mxu0
  %900 = vmatprep.mubr.bf16.mxu0 0
  %901 = vmatmul.mubr.bf16.gmra.mxu0 %v767
  %v902 = vpop.f32.mrf.mxu0
  %v903 = vadd.f32 %v794, %v902
  %v904 = vpop.f32.mrf.mxu0
  %v905 = vpop.f32.mrf.mxu0
  %v906 = vadd.f32 %v794, %v905
  %v907 = vpop.f32.mrf.mxu0
  %908 = vmatprep.mubr.bf16.mxu0 0
  %909 = vmatmul.mubr.bf16.gmra.mxu0 %v768
  %v910 = vpop.f32.mrf.mxu0
  %v911 = vadd.f32 %v794, %v910
  %v912 = vpop.f32.mrf.mxu0
  %v913 = vpop.f32.mrf.mxu0
  %v914 = vadd.f32 %v794, %v913
  %v915 = vpop.f32.mrf.mxu0
  %916 = vmatprep.mubr.bf16.mxu0 0
  %917 = vmatmul.mubr.bf16.gmra.mxu0 %v769
  %v918 = vpop.f32.mrf.mxu0
  %v919 = vadd.f32 %v794, %v918
  %v920 = vpop.f32.mrf.mxu0
  %v921 = vpop.f32.mrf.mxu0
  %v922 = vadd.f32 %v794, %v921
  %v923 = vpop.f32.mrf.mxu0
  %924 = vmatprep.mubr.bf16.mxu0 0
  %925 = vmatmul.mubr.bf16.gmra.mxu0 %v770
  %v926 = vpop.f32.mrf.mxu0
  %v927 = vadd.f32 %v794, %v926
  %v928 = vpop.f32.mrf.mxu0
  %v929 = vpop.f32.mrf.mxu0
  %v930 = vadd.f32 %v794, %v929
  %v931 = vpop.f32.mrf.mxu0
  %932 = vmatprep.mubr.bf16.mxu0 0
  %933 = vmatmul.mubr.bf16.gmra.mxu0 %v771
  %v934 = vpop.f32.mrf.mxu0
  %v935 = vadd.f32 %v794, %v934
  %v936 = vpop.f32.mrf.mxu0
  %v937 = vpop.f32.mrf.mxu0
  %v938 = vadd.f32 %v794, %v937
  %v939 = vpop.f32.mrf.mxu0
  %940 = vdwg.mxu0
  %v941 = vlaneseq
  %v942 = vshrl.u32 %v941, 7
  %v943 = vadd.s32 %v942, 8
  %v944 = vld [vmem:[%s2] sm:$0x1]
  %v945 = vlaneseq
  %v946 = vshrl.u32 %v945, 7
  %v947 = vsub.s32 0, %v946
  %v948 = vrot.slane %v944, %v947
  %vm949 = vcmp.eq.s32.totalorder %v942, %v948
  %vm950 = vcmp.eq.s32.totalorder %v943, %v948
  %v951 = vsel %vm949, 1, 0
  %v952 = vsel %vm950, 1, 0
  %v953 = vcvt.s32.f32 %v951
  %v954 = vcvt.s32.f32 %v952
  %v955 = vpack.c.bf16 %v954, %v953
  %v956 = vld [vmem:[%s8] sm:$0xff]
  %v957 = vld [vmem:[%s8 + $0x8] sm:$0xff]
  %v958 = vpack.c.bf16 %v882, %v879
  %v959 = vpack.c.bf16 %v890, %v887
  %v960 = vpack.c.bf16 %v898, %v895
  %v961 = vpack.c.bf16 %v906, %v903
  %v962 = vpack.c.bf16 %v914, %v911
  %v963 = vpack.c.bf16 %v922, %v919
  %v964 = vpack.c.bf16 %v930, %v927
  %v965 = vpack.c.bf16 %v938, %v935
  %966 = vmatprep.subr.bf16.mxu0 0
  %967 = vmatpush1.bf16.msra.mxu0 %v965
  %968 = vmatprep.subr.bf16.mxu0 0
  %969 = vmatpush1.bf16.msra.mxu0 %v964
  %970 = vmatprep.subr.bf16.mxu0 0
  %971 = vmatpush1.bf16.msra.mxu0 %v963
  %972 = vmatprep.subr.bf16.mxu0 0
  %973 = vmatpush1.bf16.msra.mxu0 %v962
  %974 = vmatprep.subr.bf16.mxu0 0
  %975 = vmatpush1.bf16.msra.mxu0 %v961
  %976 = vmatprep.subr.bf16.mxu0 0
  %977 = vmatpush1.bf16.msra.mxu0 %v960
  %978 = vmatprep.subr.bf16.mxu0 0
  %979 = vmatpush1.bf16.msra.mxu0 %v959
  %980 = vmatprep.subr.bf16.mxu0 0
  %981 = vmatpush1.bf16.msra.mxu0 %v958
  %982 = vmatprep.subr.bf16.mxu0 0
  %983 = vmatpush2.bf16.msra.mxu0 0
  %984 = vmatprep.subr.bf16.mxu0 0
  %985 = vmatpush2.bf16.msra.mxu0 0
  %986 = vmatprep.subr.bf16.mxu0 0
  %987 = vmatpush2.bf16.msra.mxu0 0
  %988 = vmatprep.subr.bf16.mxu0 0
  %989 = vmatpush2.bf16.msra.mxu0 0
  %990 = vmatprep.subr.bf16.mxu0 0
  %991 = vmatpush2.bf16.msra.mxu0 0
  %992 = vmatprep.subr.bf16.mxu0 0
  %993 = vmatpush2.bf16.msra.mxu0 0
  %994 = vmatprep.subr.bf16.mxu0 0
  %995 = vmatpush2.bf16.msra.mxu0 0
  %996 = vmatprep.subr.bf16.mxu0 0
  %997 = vmatpush2.bf16.msra.mxu0 0
  %998 = vmatprep.mubr.bf16.mxu0 0
  %999 = vmatmul.mubr.bf16.gmra.mxu0 %v955
  %v1000 = vpop.f32.mrf.mxu0
  %v1001 = vadd.f32 0.0, %v1000
  %v1002 = vpop.f32.mrf.mxu0
  %v1003 = vpop.f32.mrf.mxu0
  %v1004 = vadd.f32 0.0, %v1003
  %v1005 = vpop.f32.mrf.mxu0
  %1006 = vdwg.mxu0
  %v1007 = vadd.f32 %v956, %v1001
  %v1008 = vadd.f32 %v957, %v1004
  %1009 = vst [vmem:[%s8] sm:$0xff] %v1007
  %1010 = vst [vmem:[%s8 + $0x8] sm:$0xff] %v1008
  // Predicated region
  $region38: #{loopy_layer_forward.6} parent=0 // pred_check
    _
  $region39: #{loopy_layer_forward.6} parent=0 // pred_check_branch
    %1012 = sbr.rel (0) target = $region41
  $region40: #{loopy_layer_forward.6} parent=0 // pred_region
    _
  $region41: #{loopy_layer_forward.6} parent=0 // pred_fallthru
    _
  // Predicated region
  $region42: #{loopy_layer_forward.6} parent=0 // pred_check
    _
  $region43: #{loopy_layer_forward.6} parent=0 // pred_check_branch
    %1014 = sbr.rel (0) target = $region45
  $region44: #{loopy_layer_forward.6} parent=0 // pred_region
    _
  $region45: #{loopy_layer_forward.6} parent=0 // pred_fallthru
    _

</llo_original>
